<compile_context>
chip_gen: v7x
topology: tpu7x:2x2x1
jax: 0.10.0
libtpu: 0.0.40
codegen_flags: <defaults>
</compile_context>

<pallas_src>
import numpy as np
import jax
import jax.numpy as jnp
from jax.experimental import pallas as pl
from jax.experimental.pallas import tpu as pltpu

LANES = 128
SUBLANES = 8
BN_EPS = 1e-5


def _round_up(n, m):
    return (n + m - 1) // m * m


# ---------------------------------------------------------------------------
# Faithful (torch-semantics) layer math in plain JAX.  Used both to build the
# dense per-layer matmul matrices (linearity / basis trick) and as the f32
# reference forward for the correctness check.
# ---------------------------------------------------------------------------
def conv_transpose2d_nchw(x, w, stride, padding, output_padding):
    """torch.nn.ConvTranspose2d (bias=False). x: (N,Cin,H,W), w: (Cin,Cout,kh,kw)."""
    kh, kw = int(w.shape[2]), int(w.shape[3])
    w_conv = jnp.transpose(w[:, :, ::-1, ::-1], (1, 0, 2, 3))  # (Cout, Cin, kh, kw)
    return jax.lax.conv_general_dilated(
        x, w_conv,
        window_strides=(1, 1),
        padding=[(kh - 1 - padding, kh - 1 - padding + output_padding),
                 (kw - 1 - padding, kw - 1 - padding + output_padding)],
        lhs_dilation=(stride, stride),
        dimension_numbers=("NCHW", "OIHW", "NCHW"))


def conv2d_nchw(x, w, stride, padding):
    """torch.nn.Conv2d (bias=False). x: (N,Cin,H,W), w: (Cout,Cin,kh,kw)."""
    return jax.lax.conv_general_dilated(
        x, w,
        window_strides=(stride, stride),
        padding=[(padding, padding), (padding, padding)],
        dimension_numbers=("NCHW", "OIHW", "NCHW"))


def maxpool2d_nchw(x, kernel=3, stride=2, padding=1):
    return jax.lax.reduce_window(
        x, -jnp.inf, jax.lax.max,
        window_dimensions=(1, 1, kernel, kernel),
        window_strides=(1, 1, stride, stride),
        padding=((0, 0), (0, 0), (padding, padding), (padding, padding)))


def _nchw_to_flat(y):
    n, c, h, w = y.shape
    return jnp.transpose(y, (0, 2, 3, 1)).reshape(n, h * w * c)


def _flat_to_nchw(v, c, h, w):
    return jnp.transpose(v.reshape(-1, h, w, c), (0, 3, 1, 2))


def _dense_of(fn, in_dim):
    """Dense matrix of a linear map fn: (n, in_dim) -> (n, out_dim). Row i = fn(e_i)."""
    return fn(jnp.eye(in_dim, dtype=jnp.float32))


# ---------------------------------------------------------------------------
# Parameter preparation: torch-layout weights -> lane-dense matmul matrices.
# ---------------------------------------------------------------------------
def prepare_params(cfg, params):
    f32 = jnp.float32
    in_dim = int(cfg["in_dim"])

    stages = []           # list of (kind, [arrays])
    C, H, W = in_dim, 1, 1
    flat = C * H * W      # true flattened activation width
    flat_k = flat         # width seen inside the kernel (tail zero-padded)

    # ---- ConvTranspose2d + Tanh blocks ----
    for i, w in enumerate(params["convT_weights"]):
        stride = int(cfg["convT_stride"][i])
        pad = int(cfg["convT_padding"][i])
        opad = int(cfg["convT_output_padding"][i])
        k = int(cfg["convT_kernel_size"][i])
        Cin, Hin, Win = C, H, W

        def layer_fn(v, w=w, Cin=Cin, Hin=Hin, Win=Win, stride=stride, pad=pad, opad=opad):
            x = _flat_to_nchw(v, Cin, Hin, Win)
            return _nchw_to_flat(conv_transpose2d_nchw(x, w, stride, pad, opad))

        A = _dense_of(layer_fn, flat)                       # (flat, flat_out) true
        if flat_k > flat:                                   # zero rows for padded tail
            A = jnp.concatenate([A, jnp.zeros((flat_k - flat, A.shape[1]), f32)], axis=0)

        H = (Hin - 1) * stride - 2 * pad + k + opad
        W = (Win - 1) * stride - 2 * pad + k + opad
        C = int(cfg["convT_hidden_dim"][i])
        flat = C * H * W
        out_k = _round_up(flat, LANES)                      # lane-dense output width
        if out_k > flat:
            A = jnp.concatenate([A, jnp.zeros((A.shape[0], out_k - flat), f32)], axis=1)
        flat_k = out_k
        stages.append(("tanh_mm", [A.astype(jnp.bfloat16)]))

    # ---- Conv2d + BatchNorm2d + Tanh + MaxPool2d blocks (fully fused per block) ----
    for i, w in enumerate(params["conv_weights"]):
        stride = int(cfg["conv_stride"][i])
        pad = int(cfg["conv_padding"][i])
        k = int(cfg["conv_kernel_size"][i])
        Cin, Hin, Win = C, H, W

        def layer_fn(v, w=w, Cin=Cin, Hin=Hin, Win=Win, stride=stride, pad=pad):
            x = _flat_to_nchw(v, Cin, Hin, Win)
            return _nchw_to_flat(conv2d_nchw(x, w, stride, pad))

        A = _dense_of(layer_fn, flat)                       # (flat, Hc*Wc*Cc) true
        Hc = (Hin + 2 * pad - k) // stride + 1
        Wc = (Win + 2 * pad - k) // stride + 1
        Cc = int(cfg["conv_hidden_dim"][i])

        # Fold BatchNorm2d (inference form: running stats) into the conv matrix.
        # TODO(synk): training-mode BatchNorm (batch statistics) is not computed in-kernel.
        bn = params["bn_params"][i]
        scale_c = bn["gamma"] / jnp.sqrt(bn["var"] + BN_EPS)
        shift_c = bn["beta"] - bn["mean"] * scale_c
        A = A * jnp.tile(scale_c, Hc * Wc)[None, :]

        # Fuse MaxPool2d(3, 2, 1) into the conv matrix.  tanh is monotonic, so
        # maxpool(tanh(z)) == tanh(maxpool(z)); out-of-bounds taps reuse the always-valid
        # centre tap (so no -inf bias), and the BN shift is identical across taps, so it is
        # added once, after the max, on the pooled (narrow) result.
        PH = (Hc + 2 - 3) // 2 + 1
        PW = (Wc + 2 - 3) // 2 + 1
        Np = PH * PW * Cc
        Np_pad = _round_up(Np, LANES)
        groups = []
        for kh in range(3):
            for kw in range(3):
                sp_idx = np.zeros((PH * PW,), np.int64)
                for oh in range(PH):
                    for ow in range(PW):
                        h_in = oh * 2 + kh - 1
                        w_in = ow * 2 + kw - 1
                        if not (0 <= h_in < Hc and 0 <= w_in < Wc):
                            h_in, w_in = oh * 2, ow * 2       # centre tap (always valid)
                        sp_idx[oh * PW + ow] = h_in * Wc + w_in
                col_idx = (sp_idx[:, None] * Cc + np.arange(Cc)[None, :]).reshape(-1)
                g = A[:, col_idx]                             # (flat, Np)
                if Np_pad > Np:
                    g = jnp.concatenate(
                        [g, jnp.zeros((g.shape[0], Np_pad - Np), f32)], axis=1)
                groups.append(g)
        A_wide = jnp.concatenate(groups, axis=1)              # (flat, 9*Np_pad)
        if flat_k > flat:
            A_wide = jnp.concatenate(
                [A_wide, jnp.zeros((flat_k - flat, A_wide.shape[1]), f32)], axis=0)
        bias_pool = jnp.zeros((1, Np_pad), f32).at[0, :Np].set(jnp.tile(shift_c, PH * PW))
        stages.append(("pool_tanh", [A_wide.astype(jnp.bfloat16), bias_pool]))

        C, H, W = Cc, PH, PW
        flat, flat_k = Np, Np_pad

    # ---- classifier: Linear(C*4*4 -> hidden) + Sigmoid + Linear(hidden -> n_classes) ----
    hidden = int(cfg["hidden_dim"][-1])
    n_classes = int(cfg["n_classes"])
    HW = H * W
    assert C * HW == int(cfg["conv_hidden_dim"][-1]) * 4 * 4, "classifier in_features mismatch"

    # permutation: torch flattens NCHW (c*HW + hw), our layout is (hw*C + c)
    perm = (np.arange(C)[None, :] * HW + np.arange(HW)[:, None]).reshape(-1)
    A5 = jnp.asarray(params["cls_w1"], jnp.float32).T[perm, :]       # (HW*C, hidden)
    hidden_pad = _round_up(hidden, LANES)
    A5p = jnp.zeros((flat_k, hidden_pad), f32).at[:flat, :hidden].set(A5)
    b5p = jnp.zeros((1, hidden_pad), f32).at[0, :hidden].set(params["cls_b1"])
    stages.append(("sigmoid_mm_bias", [A5p.astype(jnp.bfloat16), b5p]))

    out_pad = _round_up(n_classes, LANES)
    A6p = jnp.zeros((hidden_pad, out_pad), f32).at[:hidden, :n_classes].set(
        jnp.asarray(params["cls_w2"], jnp.float32).T)
    b6p = jnp.zeros((1, out_pad), f32).at[0, :n_classes].set(params["cls_b2"])
    stages.append(("linear_bias", [A6p.astype(jnp.bfloat16), b6p]))

    meta = dict(in_dim=in_dim, out_pad=out_pad, n_classes=n_classes)
    return stages, meta


# ---------------------------------------------------------------------------
# Pallas kernel: chain of bf16 MXU matmuls with f32 accumulation + nonlinearities.
# ---------------------------------------------------------------------------
def _mm_bf16(h, a):
    return jnp.dot(h.astype(jnp.bfloat16), a, preferred_element_type=jnp.float32)


def _make_kernel(stage_kinds):
    def kernel(*refs):
        x_ref, out_ref = refs[0], refs[-1]
        it = iter(refs[1:-1])
        h = x_ref[...]
        for kind in stage_kinds:
            if kind == "tanh_mm":
                a = next(it)
                h = jnp.tanh(_mm_bf16(h, a[...])).astype(jnp.bfloat16)
            elif kind == "pool_tanh":
                # one wide matmul over 9 hstacked pool-tap matrices, then max over the
                # lane-aligned column groups, one bias add, one (narrow) tanh.
                a, b = next(it), next(it)
                zw = _mm_bf16(h, a[...])                 # (tile_m, n_taps * gw) f32
                gw = b.shape[-1]
                n_taps = a.shape[-1] // gw
                m = zw[:, :gw]
                for t in range(1, n_taps):
                    m = jnp.maximum(m, zw[:, t * gw:(t + 1) * gw])
                h = jnp.tanh(m + b[...]).astype(jnp.bfloat16)
            elif kind == "sigmoid_mm_bias":
                a, b = next(it), next(it)
                z = _mm_bf16(h, a[...]) + b[...]
                h = (0.5 * (jnp.tanh(0.5 * z) + 1.0)).astype(jnp.bfloat16)  # sigmoid via EUP tanh
            elif kind == "linear_bias":
                a, b = next(it), next(it)
                h = _mm_bf16(h, a[...]) + b[...]
            else:
                raise ValueError(kind)
        out_ref[...] = h.astype(out_ref.dtype)
    return kernel


def _choose_tile_m(b_pad):
    """b_pad is a multiple of 8.  Pick the largest divisor of b_pad (multiple of 8,
    <= 512 rows) that still allows >= 2 grid steps when the batch permits, so v7x's two
    TensorCores both get work while per-grid-step overhead stays amortized."""
    if b_pad <= 8:
        return b_pad
    cap = min(b_pad // 2, 512)
    best = 8
    t = 8
    while t <= cap:
        if b_pad % t == 0:
            best = t
        t += 8
    return best


def make_cnn_forward(cfg, params):
    stages, meta = prepare_params(cfg, params)
    stage_kinds = [k for k, _ in stages]
    flat_params = [a for _, arrs in stages for a in arrs]
    kernel = _make_kernel(stage_kinds)

    in_dim = meta["in_dim"]
    out_pad = meta["out_pad"]
    n_classes = meta["n_classes"]

    def param_spec(arr):
        # constant index map -> the weight block stays VMEM-resident across grid steps.
        # TODO(synk): for much larger configs, single-buffer these (pipeline_mode) and tile
        # the biggest Toeplitz matmul along K to respect v7x's 64 MiB VMEM.
        zeros = (0,) * arr.ndim
        return pl.BlockSpec(tuple(arr.shape), lambda i, zeros=zeros: zeros)

    def forward(x):
        batch = x.shape[0]
        b_pad = _round_up(batch, SUBLANES)     # no jump to multiples of 128
        tile_m = _choose_tile_m(b_pad)

        xp = jnp.zeros((b_pad, in_dim), jnp.float32).at[:batch].set(x.astype(jnp.float32))

        # advisory cost estimate for the XLA scheduler
        flops, transcendentals, bytes_accessed = 0, 0, 0
        bytes_accessed += xp.size * xp.dtype.itemsize + b_pad * out_pad * 4
        for kind, arrs in stages:
            a = arrs[0]
            kk, nn = a.shape
            flops += 2 * b_pad * kk * nn
            if kind == "pool_tanh":
                transcendentals += b_pad * arrs[1].shape[-1]
            elif kind in ("tanh_mm", "sigmoid_mm_bias"):
                transcendentals += b_pad * nn
            for arr in arrs:
                bytes_accessed += arr.size * arr.dtype.itemsize

        in_specs = [pl.BlockSpec((tile_m, in_dim), lambda i: (i, 0))]
        in_specs += [param_spec(a) for a in flat_params]
        out_spec = pl.BlockSpec((tile_m, out_pad), lambda i: (i, 0))

        out = pl.pallas_call(
            kernel,
            out_shape=jax.ShapeDtypeStruct((b_pad, out_pad), jnp.float32),
            grid_spec=pltpu.PrefetchScalarGridSpec(
                num_scalar_prefetch=0,
                grid=(b_pad // tile_m,),
                in_specs=in_specs,
                out_specs=out_spec),
            compiler_params=pltpu.CompilerParams(
                dimension_semantics=("parallel",),
                vmem_limit_bytes=32 * 1024 * 1024),
            cost_estimate=pl.CostEstimate(
                flops=int(flops), transcendentals=int(transcendentals),
                bytes_accessed=int(bytes_accessed)),
        )(xp, *flat_params)
        return out[:batch, :n_classes]

    return forward


# ---------------------------------------------------------------------------
# Demo + correctness check against the faithful f32 reference.
# ---------------------------------------------------------------------------
if __name__ == "__main__":
    cfg = dict(
        in_dim=16,
        convT_hidden_dim=[8, 8], convT_kernel_size=[4, 4], convT_stride=[1, 2],
        convT_padding=[0, 1], convT_output_padding=[0, 0],
        conv_hidden_dim=[8], conv_kernel_size=[3], conv_stride=[1], conv_padding=[1],
        hidden_dim=[32], n_classes=1,
    )

    keys = iter(jax.random.split(jax.random.PRNGKey(0), 32))
    nk = lambda: next(keys)

    # ConvTranspose2d weights: (Cin, Cout, k, k)
    convT_weights = []
    cin = cfg["in_dim"]
    for i, cout in enumerate(cfg["convT_hidden_dim"]):
        k = cfg["convT_kernel_size"][i]
        w = jax.random.normal(nk(), (cin, cout, k, k), jnp.float32) / np.sqrt(cin * k * k)
        convT_weights.append(w)
        cin = cout
    # Conv2d weights: (Cout, Cin, k, k) + BatchNorm params (inference stats)
    conv_weights, bn_params = [], []
    for i, cout in enumerate(cfg["conv_hidden_dim"]):
        k = cfg["conv_kernel_size"][i]
        w = jax.random.normal(nk(), (cout, cin, k, k), jnp.float32) / np.sqrt(cin * k * k)
        conv_weights.append(w)
        bn_params.append(dict(
            gamma=1.0 + 0.1 * jax.random.normal(nk(), (cout,), jnp.float32),
            beta=0.1 * jax.random.normal(nk(), (cout,), jnp.float32),
            mean=0.1 * jax.random.normal(nk(), (cout,), jnp.float32),
            var=jnp.abs(1.0 + 0.1 * jax.random.normal(nk(), (cout,), jnp.float32)),
        ))
        cin = cout
    # classifier (torch layout, with bias)
    F = cfg["conv_hidden_dim"][-1] * 4 * 4
    hidden, ncls = cfg["hidden_dim"][-1], cfg["n_classes"]
    lim1 = np.sqrt(6.0 / (F + hidden))
    lim2 = np.sqrt(6.0 / (hidden + ncls))
    params = dict(
        convT_weights=convT_weights, conv_weights=conv_weights, bn_params=bn_params,
        cls_w1=jax.random.uniform(nk(), (hidden, F), jnp.float32, -lim1, lim1),
        cls_b1=0.1 * jax.random.normal(nk(), (hidden,), jnp.float32),
        cls_w2=jax.random.uniform(nk(), (ncls, hidden), jnp.float32, -lim2, lim2),
        cls_b2=0.1 * jax.random.normal(nk(), (ncls,), jnp.float32),
    )

    forward = make_cnn_forward(cfg, params)

    # faithful f32 reference (torch semantics) in plain JAX
    def reference(x):
        n = x.shape[0]
        h = x.reshape(n, cfg["in_dim"], 1, 1)
        for i, w in enumerate(params["convT_weights"]):
            h = jnp.tanh(conv_transpose2d_nchw(
                h, w, cfg["convT_stride"][i], cfg["convT_padding"][i],
                cfg["convT_output_padding"][i]))
        for i, w in enumerate(params["conv_weights"]):
            h = conv2d_nchw(h, w, cfg["conv_stride"][i], cfg["conv_padding"][i])
            bn = params["bn_params"][i]
            scale = bn["gamma"] / jnp.sqrt(bn["var"] + BN_EPS)
            shift = bn["beta"] - bn["mean"] * scale
            h = jnp.tanh(h * scale[None, :, None, None] + shift[None, :, None, None])
            h = maxpool2d_nchw(h)
        h = h.reshape(n, -1)
        h = jax.nn.sigmoid(h @ params["cls_w1"].T + params["cls_b1"])
        return h @ params["cls_w2"].T + params["cls_b2"]

    # check 1: single-tile batch
    x = jax.random.normal(nk(), (8, cfg["in_dim"]), jnp.float32)
    out = jax.block_until_ready(forward(x))
    ref = reference(x)
    assert out.shape == (8, cfg["n_classes"]), out.shape
    err = float(jnp.max(jnp.abs(out - ref)))
    assert err < 5e-2, f"max abs err {err}"

    # check 2: padded, multi-grid-step batch (b_pad=24, 3 tiles of 8 rows)
    x2 = jax.random.normal(nk(), (20, cfg["in_dim"]), jnp.float32)
    out2 = jax.block_until_ready(forward(x2))
    ref2 = reference(x2)
    assert out2.shape == (20, cfg["n_classes"]), out2.shape
    err2 = float(jnp.max(jnp.abs(out2 - ref2)))
    assert err2 < 5e-2, f"max abs err {err2}"

    print("KERNEL_OK")
</pallas_src>

<mosaic_0001>
module attributes {stable_mosaic.version = 11 : i64} {
  func.func @kernel(%arg0: i32, %arg1: memref<8x16xf32, #tpu.memory_space<vmem>>, %arg2: memref<16x128xbf16, #tpu.memory_space<vmem>>, %arg3: memref<128x512xbf16, #tpu.memory_space<vmem>>, %arg4: memref<512x1152xbf16, #tpu.memory_space<vmem>>, %arg5: memref<1x128xf32, #tpu.memory_space<vmem>>, %arg6: memref<128x128xbf16, #tpu.memory_space<vmem>>, %arg7: memref<1x128xf32, #tpu.memory_space<vmem>>, %arg8: memref<128x128xbf16, #tpu.memory_space<vmem>>, %arg9: memref<1x128xf32, #tpu.memory_space<vmem>>, %arg10: memref<8x128xf32, #tpu.memory_space<vmem>>) attributes {dimension_semantics = [#tpu.dimension_semantics<parallel>], iteration_bounds = array<i64: 1>, scalar_prefetch = 0 : i64, scratch_operands = 0 : i64, tpu.core_type = #tpu.core_type<tc>, window_params = [{transform_indices = @transform_0, window_bounds = array<i64: 8, 16>}, {pipeline_mode = #tpu.pipeline_mode<synchronous>, transform_indices = @transform_1, window_bounds = array<i64: 16, 128>}, {pipeline_mode = #tpu.pipeline_mode<synchronous>, transform_indices = @transform_2, window_bounds = array<i64: 128, 512>}, {pipeline_mode = #tpu.pipeline_mode<synchronous>, transform_indices = @transform_3, window_bounds = array<i64: 512, 1152>}, {pipeline_mode = #tpu.pipeline_mode<synchronous>, transform_indices = @transform_4, window_bounds = array<i64: 1, 128>}, {pipeline_mode = #tpu.pipeline_mode<synchronous>, transform_indices = @transform_5, window_bounds = array<i64: 128, 128>}, {pipeline_mode = #tpu.pipeline_mode<synchronous>, transform_indices = @transform_6, window_bounds = array<i64: 1, 128>}, {pipeline_mode = #tpu.pipeline_mode<synchronous>, transform_indices = @transform_7, window_bounds = array<i64: 128, 128>}, {pipeline_mode = #tpu.pipeline_mode<synchronous>, transform_indices = @transform_8, window_bounds = array<i64: 1, 128>}, {transform_indices = @transform_9, window_bounds = array<i64: 8, 128>}]} {
    %c0 = arith.constant 0 : index
    %c0_0 = arith.constant 0 : index
    %0 = vector.load %arg1[%c0, %c0_0] : memref<8x16xf32, #tpu.memory_space<vmem>>, vector<8x16xf32>
    %c0_1 = arith.constant 0 : index
    %c0_2 = arith.constant 0 : index
    %1 = vector.load %arg2[%c0_1, %c0_2] : memref<16x128xbf16, #tpu.memory_space<vmem>>, vector<16x128xbf16>
    %2 = arith.truncf %0 : vector<8x16xf32> to vector<8x16xbf16>
    %cst = arith.constant dense<0.000000e+00> : vector<8x128xf32>
    %3 = tpu.matmul %2, %1, %cst {dimension_numbers = #tpu.dot_dimension_numbers<[1], [0], [0], [1], [0, 0, 1, 1], [], []>} : vector<8x16xbf16>, vector<16x128xbf16>, vector<8x128xf32> -> vector<8x128xf32>
    %4 = math.tanh %3 : vector<8x128xf32>
    %5 = arith.truncf %4 : vector<8x128xf32> to vector<8x128xbf16>
    %c0_3 = arith.constant 0 : index
    %c0_4 = arith.constant 0 : index
    %6 = vector.load %arg3[%c0_3, %c0_4] : memref<128x512xbf16, #tpu.memory_space<vmem>>, vector<128x512xbf16>
    %cst_5 = arith.constant dense<0.000000e+00> : vector<8x512xf32>
    %7 = tpu.matmul %5, %6, %cst_5 {dimension_numbers = #tpu.dot_dimension_numbers<[1], [0], [0], [1], [0, 0, 1, 1], [], []>} : vector<8x128xbf16>, vector<128x512xbf16>, vector<8x512xf32> -> vector<8x512xf32>
    %8 = math.tanh %7 : vector<8x512xf32>
    %9 = arith.truncf %8 : vector<8x512xf32> to vector<8x512xbf16>
    %c0_6 = arith.constant 0 : index
    %c0_7 = arith.constant 0 : index
    %10 = vector.load %arg4[%c0_6, %c0_7] : memref<512x1152xbf16, #tpu.memory_space<vmem>>, vector<512x1152xbf16>
    %cst_8 = arith.constant dense<0.000000e+00> : vector<8x1152xf32>
    %11 = tpu.matmul %9, %10, %cst_8 {dimension_numbers = #tpu.dot_dimension_numbers<[1], [0], [0], [1], [0, 0, 1, 1], [], []>} : vector<8x512xbf16>, vector<512x1152xbf16>, vector<8x1152xf32> -> vector<8x1152xf32>
    %12 = vector.extract_strided_slice %11 {offsets = [0, 0], sizes = [8, 128], strides = [1, 1]} : vector<8x1152xf32> to vector<8x128xf32>
    %13 = vector.extract_strided_slice %11 {offsets = [0, 128], sizes = [8, 128], strides = [1, 1]} : vector<8x1152xf32> to vector<8x128xf32>
    %14 = arith.maximumf %12, %13 : vector<8x128xf32>
    %15 = vector.extract_strided_slice %11 {offsets = [0, 256], sizes = [8, 128], strides = [1, 1]} : vector<8x1152xf32> to vector<8x128xf32>
    %16 = arith.maximumf %14, %15 : vector<8x128xf32>
    %17 = vector.extract_strided_slice %11 {offsets = [0, 384], sizes = [8, 128], strides = [1, 1]} : vector<8x1152xf32> to vector<8x128xf32>
    %18 = arith.maximumf %16, %17 : vector<8x128xf32>
    %19 = vector.extract_strided_slice %11 {offsets = [0, 512], sizes = [8, 128], strides = [1, 1]} : vector<8x1152xf32> to vector<8x128xf32>
    %20 = arith.maximumf %18, %19 : vector<8x128xf32>
    %21 = vector.extract_strided_slice %11 {offsets = [0, 640], sizes = [8, 128], strides = [1, 1]} : vector<8x1152xf32> to vector<8x128xf32>
    %22 = arith.maximumf %20, %21 : vector<8x128xf32>
    %23 = vector.extract_strided_slice %11 {offsets = [0, 768], sizes = [8, 128], strides = [1, 1]} : vector<8x1152xf32> to vector<8x128xf32>
    %24 = arith.maximumf %22, %23 : vector<8x128xf32>
    %25 = vector.extract_strided_slice %11 {offsets = [0, 896], sizes = [8, 128], strides = [1, 1]} : vector<8x1152xf32> to vector<8x128xf32>
    %26 = arith.maximumf %24, %25 : vector<8x128xf32>
    %27 = vector.extract_strided_slice %11 {offsets = [0, 1024], sizes = [8, 128], strides = [1, 1]} : vector<8x1152xf32> to vector<8x128xf32>
    %28 = arith.maximumf %26, %27 : vector<8x128xf32>
    %c0_9 = arith.constant 0 : index
    %c0_10 = arith.constant 0 : index
    %29 = vector.load %arg5[%c0_9, %c0_10] : memref<1x128xf32, #tpu.memory_space<vmem>>, vector<1x128xf32>
    %30 = vector.broadcast %29 : vector<1x128xf32> to vector<8x128xf32>
    %31 = arith.addf %28, %30 : vector<8x128xf32>
    %32 = math.tanh %31 : vector<8x128xf32>
    %33 = arith.truncf %32 : vector<8x128xf32> to vector<8x128xbf16>
    %c0_11 = arith.constant 0 : index
    %c0_12 = arith.constant 0 : index
    %34 = vector.load %arg6[%c0_11, %c0_12] : memref<128x128xbf16, #tpu.memory_space<vmem>>, vector<128x128xbf16>
    %cst_13 = arith.constant dense<0.000000e+00> : vector<8x128xf32>
    %35 = tpu.matmul %33, %34, %cst_13 {dimension_numbers = #tpu.dot_dimension_numbers<[1], [0], [0], [1], [0, 0, 1, 1], [], []>} : vector<8x128xbf16>, vector<128x128xbf16>, vector<8x128xf32> -> vector<8x128xf32>
    %c0_14 = arith.constant 0 : index
    %c0_15 = arith.constant 0 : index
    %36 = vector.load %arg7[%c0_14, %c0_15] : memref<1x128xf32, #tpu.memory_space<vmem>>, vector<1x128xf32>
    %37 = vector.broadcast %36 : vector<1x128xf32> to vector<8x128xf32>
    %38 = arith.addf %35, %37 : vector<8x128xf32>
    %cst_16 = arith.constant 5.000000e-01 : f32
    %39 = vector.broadcast %cst_16 : f32 to vector<8x128xf32>
    %40 = arith.mulf %39, %38 : vector<8x128xf32>
    %41 = math.tanh %40 : vector<8x128xf32>
    %cst_17 = arith.constant 1.000000e+00 : f32
    %42 = vector.broadcast %cst_17 : f32 to vector<8x128xf32>
    %43 = arith.addf %41, %42 : vector<8x128xf32>
    %cst_18 = arith.constant 5.000000e-01 : f32
    %44 = vector.broadcast %cst_18 : f32 to vector<8x128xf32>
    %45 = arith.mulf %44, %43 : vector<8x128xf32>
    %46 = arith.truncf %45 : vector<8x128xf32> to vector<8x128xbf16>
    %c0_19 = arith.constant 0 : index
    %c0_20 = arith.constant 0 : index
    %47 = vector.load %arg8[%c0_19, %c0_20] : memref<128x128xbf16, #tpu.memory_space<vmem>>, vector<128x128xbf16>
    %cst_21 = arith.constant dense<0.000000e+00> : vector<8x128xf32>
    %48 = tpu.matmul %46, %47, %cst_21 {dimension_numbers = #tpu.dot_dimension_numbers<[1], [0], [0], [1], [0, 0, 1, 1], [], []>} : vector<8x128xbf16>, vector<128x128xbf16>, vector<8x128xf32> -> vector<8x128xf32>
    %c0_22 = arith.constant 0 : index
    %c0_23 = arith.constant 0 : index
    %49 = vector.load %arg9[%c0_22, %c0_23] : memref<1x128xf32, #tpu.memory_space<vmem>>, vector<1x128xf32>
    %50 = vector.broadcast %49 : vector<1x128xf32> to vector<8x128xf32>
    %51 = arith.addf %48, %50 : vector<8x128xf32>
    %c0_24 = arith.constant 0 : index
    %c0_25 = arith.constant 0 : index
    %52 = vector.load %arg10[%c0_24, %c0_25] : memref<8x128xf32, #tpu.memory_space<vmem>>, vector<8x128xf32>
    tpu.vector_store %arg10[%c0_24, %c0_25], %51 {strides = array<i32>} : memref<8x128xf32, #tpu.memory_space<vmem>>, vector<8x128xf32>,
    return
  }
  func.func @transform_0(%arg0: i32) -> (i32, i32) {
    %c0_i32 = arith.constant 0 : i32
    %c0_i32_0 = arith.constant 0 : i32
    return %arg0, %c0_i32 : i32, i32
  }
  func.func @transform_1(%arg0: i32) -> (i32, i32) {
    %c0_i32 = arith.constant 0 : i32
    %c0_i32_0 = arith.constant 0 : i32
    %c0_i32_1 = arith.constant 0 : i32
    return %c0_i32, %c0_i32_0 : i32, i32
  }
  func.func @transform_2(%arg0: i32) -> (i32, i32) {
    %c0_i32 = arith.constant 0 : i32
    %c0_i32_0 = arith.constant 0 : i32
    %c0_i32_1 = arith.constant 0 : i32
    return %c0_i32, %c0_i32_0 : i32, i32
  }
  func.func @transform_3(%arg0: i32) -> (i32, i32) {
    %c0_i32 = arith.constant 0 : i32
    %c0_i32_0 = arith.constant 0 : i32
    %c0_i32_1 = arith.constant 0 : i32
    return %c0_i32, %c0_i32_0 : i32, i32
  }
  func.func @transform_4(%arg0: i32) -> (i32, i32) {
    %c0_i32 = arith.constant 0 : i32
    %c0_i32_0 = arith.constant 0 : i32
    %c0_i32_1 = arith.constant 0 : i32
    return %c0_i32, %c0_i32_0 : i32, i32
  }
  func.func @transform_5(%arg0: i32) -> (i32, i32) {
    %c0_i32 = arith.constant 0 : i32
    %c0_i32_0 = arith.constant 0 : i32
    %c0_i32_1 = arith.constant 0 : i32
    return %c0_i32, %c0_i32_0 : i32, i32
  }
  func.func @transform_6(%arg0: i32) -> (i32, i32) {
    %c0_i32 = arith.constant 0 : i32
    %c0_i32_0 = arith.constant 0 : i32
    %c0_i32_1 = arith.constant 0 : i32
    return %c0_i32, %c0_i32_0 : i32, i32
  }
  func.func @transform_7(%arg0: i32) -> (i32, i32) {
    %c0_i32 = arith.constant 0 : i32
    %c0_i32_0 = arith.constant 0 : i32
    %c0_i32_1 = arith.constant 0 : i32
    return %c0_i32, %c0_i32_0 : i32, i32
  }
  func.func @transform_8(%arg0: i32) -> (i32, i32) {
    %c0_i32 = arith.constant 0 : i32
    %c0_i32_0 = arith.constant 0 : i32
    %c0_i32_1 = arith.constant 0 : i32
    return %c0_i32, %c0_i32_0 : i32, i32
  }
  func.func @transform_9(%arg0: i32) -> (i32, i32) {
    %c0_i32 = arith.constant 0 : i32
    %c0_i32_0 = arith.constant 0 : i32
    return %arg0, %c0_i32 : i32, i32
  }
}

</mosaic_0001>

<llo_original>
// kernel: tpu_custom_call.1
$region0: #{tpu_custom_call.1}
  #allocation0 [shape = 'u32[]', space=smem, size = 0x4, offset = 0x4, fixed_abs, tag = 'smem constant byte address 0x4 - core index']
  #allocation1 [shape = 'u32[144,128]{1,0:T(1,128)}', space=vmem, size = 0x12000, scoped, tag = 'internal scratch']
  %s0 = inlined_call_operand.hbm [shape: f32[8,16], index: 0, kind: input, shape index: {}]
  %s1 = inlined_call_operand.hbm [shape: bf16[16,128], index: 1, kind: input, shape index: {}]
  %s2 = inlined_call_operand.hbm [shape: bf16[128,512], index: 2, kind: input, shape index: {}]
  %s3 = inlined_call_operand.hbm [shape: bf16[512,1152], index: 3, kind: input, shape index: {}]
  %s4 = inlined_call_operand.hbm [shape: f32[1,128], index: 4, kind: input, shape index: {}]
  %s5 = inlined_call_operand.hbm [shape: bf16[128,128], index: 5, kind: input, shape index: {}]
  %s6 = inlined_call_operand.hbm [shape: f32[1,128], index: 6, kind: input, shape index: {}]
  %s7 = inlined_call_operand.hbm [shape: bf16[128,128], index: 7, kind: input, shape index: {}]
  %s8 = inlined_call_operand.hbm [shape: f32[1,128], index: 8, kind: input, shape index: {}]
  %s9 = inlined_call_operand.hbm [shape: f32[8,128], index: 9, kind: output, shape index: {}]
  %s10 = sld [smem:[#allocation0]]
  $region82: #{tpu_custom_call.1} parent=0
    _
  %s12 = ssub.s32 1, %s10
  %s13 = scalar_select 0, %s12, %s10
  $region1: #{tpu_custom_call.1} parent=0
    #allocation2 [shape = 'u8[4096]{0}', space=vmem, size = 0x1000, scoped, tag = 'input window, operand 0, single buffered']
    #allocation3 [shape = 's32[1]{0}', space=sflag, size = 0x4, scoped, tag = 'scoped memory for tpu_custom_call.1']
    #allocation4 [shape = 's32[1]{0}', space=sflag, size = 0x4, scoped, tag = 'scoped memory for tpu_custom_call.1']
    #allocation5 [shape = 'u8[4096]{0}', space=vmem, size = 0x1000, scoped, tag = 'input window, operand 1, single buffered']
    #allocation6 [shape = 's32[1]{0}', space=sflag, size = 0x4, scoped, tag = 'scoped memory for tpu_custom_call.1']
    #allocation7 [shape = 'u8[131072]{0}', space=vmem, size = 0x20000, scoped, tag = 'input window, operand 2, single buffered']
    #allocation8 [shape = 'u8[1179648]{0}', space=vmem, size = 0x120000, scoped, tag = 'input window, operand 3, single buffered']
    #allocation9 [shape = 's32[1]{0}', space=sflag, size = 0x4, scoped, tag = 'scoped memory for tpu_custom_call.1']
    #allocation10 [shape = 'u8[512]{0}', space=vmem, size = 0x400, scoped, tag = 'input window, operand 4, single buffered']
    #allocation11 [shape = 'u8[32768]{0}', space=vmem, size = 0x8000, scoped, tag = 'input window, operand 5, single buffered']
    #allocation12 [shape = 's32[1]{0}', space=sflag, size = 0x4, scoped, tag = 'scoped memory for tpu_custom_call.1']
    #allocation13 [shape = 'u8[512]{0}', space=vmem, size = 0x400, scoped, tag = 'input window, operand 6, single buffered']
    #allocation14 [shape = 'u8[32768]{0}', space=vmem, size = 0x8000, scoped, tag = 'input window, operand 7, single buffered']
    #allocation15 [shape = 's32[1]{0}', space=sflag, size = 0x4, scoped, tag = 'scoped memory for tpu_custom_call.1']
    #allocation16 [shape = 'u8[512]{0}', space=vmem, size = 0x400, scoped, tag = 'input window, operand 8, single buffered']
    #allocation17 [shape = 'u8[4096]{0}', space=vmem, size = 0x1000, scoped, tag = 'output window, operand 0, single buffered']
    %14 = vsyncpa [#allocation3], 0
    %15 = vsyncpa [#allocation6], 0
    %16 = vsyncpa [#allocation9], 0
    %17 = vsyncpa [#allocation12], 0
    %18 = vsyncpa [#allocation15], 0
    %19 = vsyncpa [#allocation4], 0
    // Predicated region
    $region2: #{tpu_custom_call.1} parent=1 // pred_check
      _
    $region3: #{tpu_custom_call.1} parent=1 // pred_check_branch
      %21 = sbr.rel (0) target = $region5
    $region4: #{tpu_custom_call.1} parent=1 // pred_region
      %s23 = ssub.s32 128, 128
      %24 = vsyncadd [#allocation3], %s23
      %s26 = sshll.u32 [#allocation2], 4
      %s27 = int_to_ptr.vmem [resolvable:$true] %s26
      %29 = dma.hbm_to_vmem [thread:$0]  %s0, 128, %s27, [#allocation3]
    $region5: #{tpu_custom_call.1} parent=1 // pred_fallthru
      _
    // Predicated region
    $region6: #{tpu_custom_call.1} parent=1 // pred_check
      _
    $region7: #{tpu_custom_call.1} parent=1 // pred_check_branch
      %31 = sbr.rel (0) target = $region9
    $region8: #{tpu_custom_call.1} parent=1 // pred_region
      %s33 = ssub.s32 128, 128
      %34 = vsyncadd [#allocation6], %s33
      %s35 = sshll.u32 [#allocation5], 4
      %s36 = int_to_ptr.vmem [resolvable:$true] %s35
      %41 = dma.hbm_to_vmem [thread:$0]  %s1, 128, %s36, [#allocation6], 64, 64, 4
    $region9: #{tpu_custom_call.1} parent=1 // pred_fallthru
      _
    // Predicated region
    $region10: #{tpu_custom_call.1} parent=1 // pred_check
      _
    $region11: #{tpu_custom_call.1} parent=1 // pred_check_branch
      %43 = sbr.rel (0) target = $region13
    $region12: #{tpu_custom_call.1} parent=1 // pred_region
      %s45 = ssub.s32 4096, 4096
      %46 = vsyncadd [#allocation6], %s45
      %s47 = sshll.u32 [#allocation7], 4
      %s48 = int_to_ptr.vmem [resolvable:$true] %s47
      %53 = dma.hbm_to_vmem [thread:$0]  %s2, 4096, %s48, [#allocation6], 256, 256, 16
    $region13: #{tpu_custom_call.1} parent=1 // pred_fallthru
      _
    // Predicated region
    $region14: #{tpu_custom_call.1} parent=1 // pred_check
      _
    $region15: #{tpu_custom_call.1} parent=1 // pred_check_branch
      %55 = sbr.rel (0) target = $region17
    $region16: #{tpu_custom_call.1} parent=1 // pred_region
      %s57 = ssub.s32 36864, 36864
      %58 = vsyncadd [#allocation9], %s57
      %s59 = sshll.u32 [#allocation8], 4
      %s60 = int_to_ptr.vmem [resolvable:$true] %s59
      %65 = dma.hbm_to_vmem [thread:$0]  %s3, 36864, %s60, [#allocation9], 576, 576, 36
    $region17: #{tpu_custom_call.1} parent=1 // pred_fallthru
      _
    // Predicated region
    $region18: #{tpu_custom_call.1} parent=1 // pred_check
      _
    $region19: #{tpu_custom_call.1} parent=1 // pred_check_branch
      %67 = sbr.rel (0) target = $region21
    $region20: #{tpu_custom_call.1} parent=1 // pred_region
      %s69 = ssub.s32 16, 16
      %70 = vsyncadd [#allocation9], %s69
      %s72 = sshll.u32 [#allocation10], 4
      %s73 = int_to_ptr.vmem [resolvable:$true] %s72
      %75 = dma.hbm_to_vmem [thread:$0]  %s4, 16, %s73, [#allocation9]
    $region21: #{tpu_custom_call.1} parent=1 // pred_fallthru
      _
    // Predicated region
    $region22: #{tpu_custom_call.1} parent=1 // pred_check
      _
    $region23: #{tpu_custom_call.1} parent=1 // pred_check_branch
      %77 = sbr.rel (0) target = $region25
    $region24: #{tpu_custom_call.1} parent=1 // pred_region
      %s79 = ssub.s32 1024, 1024
      %80 = vsyncadd [#allocation12], %s79
      %s81 = sshll.u32 [#allocation11], 4
      %s82 = int_to_ptr.vmem [resolvable:$true] %s81
      %87 = dma.hbm_to_vmem [thread:$0]  %s5, 1024, %s82, [#allocation12], 64, 64, 4
    $region25: #{tpu_custom_call.1} parent=1 // pred_fallthru
      _
    // Predicated region
    $region26: #{tpu_custom_call.1} parent=1 // pred_check
      _
    $region27: #{tpu_custom_call.1} parent=1 // pred_check_branch
      %89 = sbr.rel (0) target = $region29
    $region28: #{tpu_custom_call.1} parent=1 // pred_region
      %s91 = ssub.s32 16, 16
      %92 = vsyncadd [#allocation12], %s91
      %s94 = sshll.u32 [#allocation13], 4
      %s95 = int_to_ptr.vmem [resolvable:$true] %s94
      %97 = dma.hbm_to_vmem [thread:$0]  %s6, 16, %s95, [#allocation12]
    $region29: #{tpu_custom_call.1} parent=1 // pred_fallthru
      _
    // Predicated region
    $region30: #{tpu_custom_call.1} parent=1 // pred_check
      _
    $region31: #{tpu_custom_call.1} parent=1 // pred_check_branch
      %99 = sbr.rel (0) target = $region33
    $region32: #{tpu_custom_call.1} parent=1 // pred_region
      %s101 = ssub.s32 1024, 1024
      %102 = vsyncadd [#allocation15], %s101
      %s103 = sshll.u32 [#allocation14], 4
      %s104 = int_to_ptr.vmem [resolvable:$true] %s103
      %109 = dma.hbm_to_vmem [thread:$0]  %s7, 1024, %s104, [#allocation15], 64, 64, 4
    $region33: #{tpu_custom_call.1} parent=1 // pred_fallthru
      _
    // Predicated region
    $region34: #{tpu_custom_call.1} parent=1 // pred_check
      _
    $region35: #{tpu_custom_call.1} parent=1 // pred_check_branch
      %111 = sbr.rel (0) target = $region37
    $region36: #{tpu_custom_call.1} parent=1 // pred_region
      %s113 = ssub.s32 16, 16
      %114 = vsyncadd [#allocation15], %s113
      %s116 = sshll.u32 [#allocation16], 4
      %s117 = int_to_ptr.vmem [resolvable:$true] %s116
      %119 = dma.hbm_to_vmem [thread:$0]  %s8, 16, %s117, [#allocation15]
    $region37: #{tpu_custom_call.1} parent=1 // pred_fallthru
      _
    // Predicated region
    $region38: #{tpu_custom_call.1} parent=1 // pred_check
      _
    $region39: #{tpu_custom_call.1} parent=1 // pred_check_branch
      %121 = sbr.rel (0) target = $region41
    $region40: #{tpu_custom_call.1} parent=1 // pred_region
      %122 = dma.done [#allocation3], 128
    $region41: #{tpu_custom_call.1} parent=1 // pred_fallthru
      _
    // Predicated region
    $region42: #{tpu_custom_call.1} parent=1 // pred_check
      _
    $region43: #{tpu_custom_call.1} parent=1 // pred_check_branch
      %124 = sbr.rel (0) target = $region45
    $region44: #{tpu_custom_call.1} parent=1 // pred_region
      %125 = dma.done [#allocation6], 128
    $region45: #{tpu_custom_call.1} parent=1 // pred_fallthru
      _
    // Predicated region
    $region46: #{tpu_custom_call.1} parent=1 // pred_check
      _
    $region47: #{tpu_custom_call.1} parent=1 // pred_check_branch
      %127 = sbr.rel (0) target = $region49
    $region48: #{tpu_custom_call.1} parent=1 // pred_region
      %128 = dma.done [#allocation6], 4096
    $region49: #{tpu_custom_call.1} parent=1 // pred_fallthru
      _
    // Predicated region
    $region50: #{tpu_custom_call.1} parent=1 // pred_check
      _
    $region51: #{tpu_custom_call.1} parent=1 // pred_check_branch
      %130 = sbr.rel (0) target = $region53
    $region52: #{tpu_custom_call.1} parent=1 // pred_region
      %131 = dma.done [#allocation9], 36864
    $region53: #{tpu_custom_call.1} parent=1 // pred_fallthru
      _
    // Predicated region
    $region54: #{tpu_custom_call.1} parent=1 // pred_check
      _
    $region55: #{tpu_custom_call.1} parent=1 // pred_check_branch
      %133 = sbr.rel (0) target = $region57
    $region56: #{tpu_custom_call.1} parent=1 // pred_region
      %134 = dma.done [#allocation9], 16
    $region57: #{tpu_custom_call.1} parent=1 // pred_fallthru
      _
    // Predicated region
    $region58: #{tpu_custom_call.1} parent=1 // pred_check
      _
    $region59: #{tpu_custom_call.1} parent=1 // pred_check_branch
      %136 = sbr.rel (0) target = $region61
    $region60: #{tpu_custom_call.1} parent=1 // pred_region
      %137 = dma.done [#allocation12], 1024
    $region61: #{tpu_custom_call.1} parent=1 // pred_fallthru
      _
    // Predicated region
    $region62: #{tpu_custom_call.1} parent=1 // pred_check
      _
    $region63: #{tpu_custom_call.1} parent=1 // pred_check_branch
      %139 = sbr.rel (0) target = $region65
    $region64: #{tpu_custom_call.1} parent=1 // pred_region
      %140 = dma.done [#allocation12], 16
    $region65: #{tpu_custom_call.1} parent=1 // pred_fallthru
      _
    // Predicated region
    $region66: #{tpu_custom_call.1} parent=1 // pred_check
      _
    $region67: #{tpu_custom_call.1} parent=1 // pred_check_branch
      %142 = sbr.rel (0) target = $region69
    $region68: #{tpu_custom_call.1} parent=1 // pred_region
      %143 = dma.done [#allocation15], 1024
    $region69: #{tpu_custom_call.1} parent=1 // pred_fallthru
      _
    // Predicated region
    $region70: #{tpu_custom_call.1} parent=1 // pred_check
      _
    $region71: #{tpu_custom_call.1} parent=1 // pred_check_branch
      %145 = sbr.rel (0) target = $region73
    $region72: #{tpu_custom_call.1} parent=1 // pred_region
      %146 = dma.done [#allocation15], 16
    $region73: #{tpu_custom_call.1} parent=1 // pred_fallthru
      _
    %v148 = vld [vmem:[#allocation2] sm:$0xff]
    %v149 = vld [vmem:[#allocation5] sm:$0xf]
    %v150 = vld [vmem:[#allocation5 + $0x4] sm:$0xf]
    %v151 = vpack.c.bf16 %v148, %v148
    %v154 = vunpack.c.l.b16 %v149
    %v155 = vunpack.c.l.b16 %v150
    %v156 = vpack.c.b16 %v155, %v154
    %vm158 = vcmask 130048
    %v160 = vsel %vm158, %v151, 0
    %162 = vmatprep.subr.bf16.mxu0 0
    %163 = vmatpush1.bf16.msra.mxu0 %v156
    %164 = vmatprep.subr.bf16.mxu0 0
    %165 = vmatpush1.bf16.msra.mxu0 0
    %166 = vmatprep.subr.bf16.mxu0 0
    %167 = vmatpush1.bf16.msra.mxu0 0
    %168 = vmatprep.subr.bf16.mxu0 0
    %169 = vmatpush1.bf16.msra.mxu0 0
    %170 = vmatprep.subr.bf16.mxu0 0
    %171 = vmatpush1.bf16.msra.mxu0 0
    %172 = vmatprep.subr.bf16.mxu0 0
    %173 = vmatpush1.bf16.msra.mxu0 0
    %174 = vmatprep.subr.bf16.mxu0 0
    %175 = vmatpush1.bf16.msra.mxu0 0
    %176 = vmatprep.subr.bf16.mxu0 0
    %177 = vmatpush1.bf16.msra.mxu0 0
    %178 = vmatprep.subr.bf16.mxu0 0
    %179 = vmatpush1.bf16.msra.mxu0 0
    %180 = vmatprep.subr.bf16.mxu0 0
    %181 = vmatpush1.bf16.msra.mxu0 0
    %182 = vmatprep.subr.bf16.mxu0 0
    %183 = vmatpush1.bf16.msra.mxu0 0
    %184 = vmatprep.subr.bf16.mxu0 0
    %185 = vmatpush1.bf16.msra.mxu0 0
    %186 = vmatprep.subr.bf16.mxu0 0
    %187 = vmatpush1.bf16.msra.mxu0 0
    %188 = vmatprep.subr.bf16.mxu0 0
    %189 = vmatpush1.bf16.msra.mxu0 0
    %190 = vmatprep.subr.bf16.mxu0 0
    %191 = vmatpush1.bf16.msra.mxu0 0
    %192 = vmatprep.subr.bf16.mxu0 0
    %193 = vmatpush1.bf16.msra.mxu0 0
    %194 = vmatprep.mubr.bf16.mxu0 0
    %195 = vmatmul.mubr.bf16.gmra.mrb[0].mxu0 %v160
    %v196 = vpop.f32.mrb[0].mxu0
    %v197 = vadd.f32 0.0, %v196
    %v198 = vpop.f32.mrb[0].mxu0
    %v199 = vpop.f32.mrb[0].mxu0
    %v200 = vpop.f32.mrb[0].mxu0
    %201 = vdwg.mxu0
    %v202 = vtanh.pop %v197
    %v203 = vpack.c.bf16 %v202, %v202
    %v204 = vld [vmem:[#allocation7] sm:$0xff]
    %v205 = vld [vmem:[#allocation7 + $0x8] sm:$0xff]
    %v206 = vld [vmem:[#allocation7 + $0x10] sm:$0xff]
    %v207 = vld [vmem:[#allocation7 + $0x18] sm:$0xff]
    %v208 = vld [vmem:[#allocation7 + $0x20] sm:$0xff]
    %v209 = vld [vmem:[#allocation7 + $0x28] sm:$0xff]
    %v210 = vld [vmem:[#allocation7 + $0x30] sm:$0xff]
    %v211 = vld [vmem:[#allocation7 + $0x38] sm:$0xff]
    %v212 = vld [vmem:[#allocation7 + $0x40] sm:$0xff]
    %v213 = vld [vmem:[#allocation7 + $0x48] sm:$0xff]
    %v214 = vld [vmem:[#allocation7 + $0x50] sm:$0xff]
    %v215 = vld [vmem:[#allocation7 + $0x58] sm:$0xff]
    %v216 = vld [vmem:[#allocation7 + $0x60] sm:$0xff]
    %v217 = vld [vmem:[#allocation7 + $0x68] sm:$0xff]
    %v218 = vld [vmem:[#allocation7 + $0x70] sm:$0xff]
    %v219 = vld [vmem:[#allocation7 + $0x78] sm:$0xff]
    %v220 = vld [vmem:[#allocation7 + $0x80] sm:$0xff]
    %v221 = vld [vmem:[#allocation7 + $0x88] sm:$0xff]
    %v222 = vld [vmem:[#allocation7 + $0x90] sm:$0xff]
    %v223 = vld [vmem:[#allocation7 + $0x98] sm:$0xff]
    %v224 = vld [vmem:[#allocation7 + $0xa0] sm:$0xff]
    %v225 = vld [vmem:[#allocation7 + $0xa8] sm:$0xff]
    %v226 = vld [vmem:[#allocation7 + $0xb0] sm:$0xff]
    %v227 = vld [vmem:[#allocation7 + $0xb8] sm:$0xff]
    %v228 = vld [vmem:[#allocation7 + $0xc0] sm:$0xff]
    %v229 = vld [vmem:[#allocation7 + $0xc8] sm:$0xff]
    %v230 = vld [vmem:[#allocation7 + $0xd0] sm:$0xff]
    %v231 = vld [vmem:[#allocation7 + $0xd8] sm:$0xff]
    %v232 = vld [vmem:[#allocation7 + $0xe0] sm:$0xff]
    %v233 = vld [vmem:[#allocation7 + $0xe8] sm:$0xff]
    %v234 = vld [vmem:[#allocation7 + $0xf0] sm:$0xff]
    %v235 = vld [vmem:[#allocation7 + $0xf8] sm:$0xff]
    %v268 = vunpack.c.l.b16 %v204
    %v269 = vunpack.c.h.b16 %v204
    %v270 = vunpack.c.l.b16 %v205
    %v271 = vunpack.c.h.b16 %v205
    %v272 = vunpack.c.l.b16 %v206
    %v273 = vunpack.c.h.b16 %v206
    %v274 = vunpack.c.l.b16 %v207
    %v275 = vunpack.c.h.b16 %v207
    %v276 = vunpack.c.l.b16 %v208
    %v277 = vunpack.c.h.b16 %v208
    %v278 = vunpack.c.l.b16 %v209
    %v279 = vunpack.c.h.b16 %v209
    %v280 = vunpack.c.l.b16 %v210
    %v281 = vunpack.c.h.b16 %v210
    %v282 = vunpack.c.l.b16 %v211
    %v283 = vunpack.c.h.b16 %v211
    %v284 = vunpack.c.l.b16 %v212
    %v285 = vunpack.c.h.b16 %v212
    %v286 = vunpack.c.l.b16 %v213
    %v287 = vunpack.c.h.b16 %v213
    %v288 = vunpack.c.l.b16 %v214
    %v289 = vunpack.c.h.b16 %v214
    %v290 = vunpack.c.l.b16 %v215
    %v291 = vunpack.c.h.b16 %v215
    %v292 = vunpack.c.l.b16 %v216
    %v293 = vunpack.c.h.b16 %v216
    %v294 = vunpack.c.l.b16 %v217
    %v295 = vunpack.c.h.b16 %v217
    %v296 = vunpack.c.l.b16 %v218
    %v297 = vunpack.c.h.b16 %v218
    %v298 = vunpack.c.l.b16 %v219
    %v299 = vunpack.c.h.b16 %v219
    %v300 = vunpack.c.l.b16 %v220
    %v301 = vunpack.c.h.b16 %v220
    %v302 = vunpack.c.l.b16 %v221
    %v303 = vunpack.c.h.b16 %v221
    %v304 = vunpack.c.l.b16 %v222
    %v305 = vunpack.c.h.b16 %v222
    %v306 = vunpack.c.l.b16 %v223
    %v307 = vunpack.c.h.b16 %v223
    %v308 = vunpack.c.l.b16 %v224
    %v309 = vunpack.c.h.b16 %v224
    %v310 = vunpack.c.l.b16 %v225
    %v311 = vunpack.c.h.b16 %v225
    %v312 = vunpack.c.l.b16 %v226
    %v313 = vunpack.c.h.b16 %v226
    %v314 = vunpack.c.l.b16 %v227
    %v315 = vunpack.c.h.b16 %v227
    %v316 = vunpack.c.l.b16 %v228
    %v317 = vunpack.c.h.b16 %v228
    %v318 = vunpack.c.l.b16 %v229
    %v319 = vunpack.c.h.b16 %v229
    %v320 = vunpack.c.l.b16 %v230
    %v321 = vunpack.c.h.b16 %v230
    %v322 = vunpack.c.l.b16 %v231
    %v323 = vunpack.c.h.b16 %v231
    %v324 = vunpack.c.l.b16 %v232
    %v325 = vunpack.c.h.b16 %v232
    %v326 = vunpack.c.l.b16 %v233
    %v327 = vunpack.c.h.b16 %v233
    %v328 = vunpack.c.l.b16 %v234
    %v329 = vunpack.c.h.b16 %v234
    %v330 = vunpack.c.l.b16 %v235
    %v331 = vunpack.c.h.b16 %v235
    %v332 = vpack.c.b16 %v272, %v268
    %v333 = vpack.c.b16 %v273, %v269
    %v334 = vpack.c.b16 %v274, %v270
    %v335 = vpack.c.b16 %v275, %v271
    %v336 = vpack.c.b16 %v280, %v276
    %v337 = vpack.c.b16 %v281, %v277
    %v338 = vpack.c.b16 %v282, %v278
    %v339 = vpack.c.b16 %v283, %v279
    %v340 = vpack.c.b16 %v288, %v284
    %v341 = vpack.c.b16 %v289, %v285
    %v342 = vpack.c.b16 %v290, %v286
    %v343 = vpack.c.b16 %v291, %v287
    %v344 = vpack.c.b16 %v296, %v292
    %v345 = vpack.c.b16 %v297, %v293
    %v346 = vpack.c.b16 %v298, %v294
    %v347 = vpack.c.b16 %v299, %v295
    %v348 = vpack.c.b16 %v304, %v300
    %v349 = vpack.c.b16 %v305, %v301
    %v350 = vpack.c.b16 %v306, %v302
    %v351 = vpack.c.b16 %v307, %v303
    %v352 = vpack.c.b16 %v312, %v308
    %v353 = vpack.c.b16 %v313, %v309
    %v354 = vpack.c.b16 %v314, %v310
    %v355 = vpack.c.b16 %v315, %v311
    %v356 = vpack.c.b16 %v320, %v316
    %v357 = vpack.c.b16 %v321, %v317
    %v358 = vpack.c.b16 %v322, %v318
    %v359 = vpack.c.b16 %v323, %v319
    %v360 = vpack.c.b16 %v328, %v324
    %v361 = vpack.c.b16 %v329, %v325
    %v362 = vpack.c.b16 %v330, %v326
    %v363 = vpack.c.b16 %v331, %v327
    %396 = vmatprep.subr.bf16.mxu0 %v333
    %397 = vmatpush1.bf16.msra.mxu0 %v332
    %398 = vmatprep.subr.bf16.mxu0 %v337
    %399 = vmatpush1.bf16.msra.mxu0 %v336
    %400 = vmatprep.subr.bf16.mxu0 %v341
    %401 = vmatpush1.bf16.msra.mxu0 %v340
    %402 = vmatprep.subr.bf16.mxu0 %v345
    %403 = vmatpush1.bf16.msra.mxu0 %v344
    %404 = vmatprep.subr.bf16.mxu0 %v349
    %405 = vmatpush1.bf16.msra.mxu0 %v348
    %406 = vmatprep.subr.bf16.mxu0 %v353
    %407 = vmatpush1.bf16.msra.mxu0 %v352
    %408 = vmatprep.subr.bf16.mxu0 %v357
    %409 = vmatpush1.bf16.msra.mxu0 %v356
    %410 = vmatprep.subr.bf16.mxu0 %v361
    %411 = vmatpush1.bf16.msra.mxu0 %v360
    %412 = vmatprep.subr.bf16.mxu0 0
    %413 = vmatpush1.bf16.msra.mxu0 0
    %414 = vmatprep.subr.bf16.mxu0 0
    %415 = vmatpush1.bf16.msra.mxu0 0
    %416 = vmatprep.subr.bf16.mxu0 0
    %417 = vmatpush1.bf16.msra.mxu0 0
    %418 = vmatprep.subr.bf16.mxu0 0
    %419 = vmatpush1.bf16.msra.mxu0 0
    %420 = vmatprep.subr.bf16.mxu0 0
    %421 = vmatpush1.bf16.msra.mxu0 0
    %422 = vmatprep.subr.bf16.mxu0 0
    %423 = vmatpush1.bf16.msra.mxu0 0
    %424 = vmatprep.subr.bf16.mxu0 0
    %425 = vmatpush1.bf16.msra.mxu0 0
    %426 = vmatprep.subr.bf16.mxu0 0
    %427 = vmatpush1.bf16.msra.mxu0 0
    %428 = vmatprep.mubr.bf16.mxu0 0
    %429 = vmatmul.mubr.bf16.gmra.mrb[0].mxu0 %v203
    %v430 = vpop.f32.mrb[0].mxu0
    %v431 = vadd.f32 0.0, %v430
    %v432 = vpop.f32.mrb[0].mxu0
    %v433 = vadd.f32 0.0, %v432
    %v434 = vpop.f32.mrb[0].mxu0
    %v435 = vpop.f32.mrb[0].mxu0
    %436 = vdwg.mxu0
    %437 = vmatprep.subr.bf16.mxu0 %v335
    %438 = vmatpush1.bf16.msra.mxu0 %v334
    %439 = vmatprep.subr.bf16.mxu0 %v339
    %440 = vmatpush1.bf16.msra.mxu0 %v338
    %441 = vmatprep.subr.bf16.mxu0 %v343
    %442 = vmatpush1.bf16.msra.mxu0 %v342
    %443 = vmatprep.subr.bf16.mxu0 %v347
    %444 = vmatpush1.bf16.msra.mxu0 %v346
    %445 = vmatprep.subr.bf16.mxu0 %v351
    %446 = vmatpush1.bf16.msra.mxu0 %v350
    %447 = vmatprep.subr.bf16.mxu0 %v355
    %448 = vmatpush1.bf16.msra.mxu0 %v354
    %449 = vmatprep.subr.bf16.mxu0 %v359
    %450 = vmatpush1.bf16.msra.mxu0 %v358
    %451 = vmatprep.subr.bf16.mxu0 %v363
    %452 = vmatpush1.bf16.msra.mxu0 %v362
    %453 = vmatprep.subr.bf16.mxu0 0
    %454 = vmatpush1.bf16.msra.mxu0 0
    %455 = vmatprep.subr.bf16.mxu0 0
    %456 = vmatpush1.bf16.msra.mxu0 0
    %457 = vmatprep.subr.bf16.mxu0 0
    %458 = vmatpush1.bf16.msra.mxu0 0
    %459 = vmatprep.subr.bf16.mxu0 0
    %460 = vmatpush1.bf16.msra.mxu0 0
    %461 = vmatprep.subr.bf16.mxu0 0
    %462 = vmatpush1.bf16.msra.mxu0 0
    %463 = vmatprep.subr.bf16.mxu0 0
    %464 = vmatpush1.bf16.msra.mxu0 0
    %465 = vmatprep.subr.bf16.mxu0 0
    %466 = vmatpush1.bf16.msra.mxu0 0
    %467 = vmatprep.subr.bf16.mxu0 0
    %468 = vmatpush1.bf16.msra.mxu0 0
    %469 = vmatprep.mubr.bf16.mxu0 0
    %470 = vmatmul.mubr.bf16.gmra.mrb[0].mxu0 %v203
    %v471 = vpop.f32.mrb[0].mxu0
    %v472 = vadd.f32 0.0, %v471
    %v473 = vpop.f32.mrb[0].mxu0
    %v474 = vadd.f32 0.0, %v473
    %v475 = vpop.f32.mrb[0].mxu0
    %v476 = vpop.f32.mrb[0].mxu0
    %477 = vdwg.mxu0
    %v478 = vtanh.pop %v431
    %v479 = vtanh.pop %v433
    %v480 = vtanh.pop %v472
    %v481 = vtanh.pop %v474
    %v482 = vpack.c.bf16 %v478, %v478
    %v483 = vpack.c.bf16 %v479, %v479
    %v484 = vpack.c.bf16 %v480, %v480
    %v485 = vpack.c.bf16 %v481, %v481
    %v486 = vld [vmem:[#allocation8] sm:$0xff]
    %v487 = vld [vmem:[#allocation8 + $0x8] sm:$0xff]
    %v488 = vld [vmem:[#allocation8 + $0x10] sm:$0xff]
    %v489 = vld [vmem:[#allocation8 + $0x18] sm:$0xff]
    %v490 = vld [vmem:[#allocation8 + $0x20] sm:$0xf]
    %v491 = vld [vmem:[#allocation8 + $0x24] sm:$0xff]
    %v492 = vld [vmem:[#allocation8 + $0x2c] sm:$0xff]
    %v493 = vld [vmem:[#allocation8 + $0x34] sm:$0xff]
    %v494 = vld [vmem:[#allocation8 + $0x3c] sm:$0xff]
    %v495 = vld [vmem:[#allocation8 + $0x44] sm:$0xf]
    %v496 = vld [vmem:[#allocation8 + $0x48] sm:$0xff]
    %v497 = vld [vmem:[#allocation8 + $0x50] sm:$0xff]
    %v498 = vld [vmem:[#allocation8 + $0x58] sm:$0xff]
    %v499 = vld [vmem:[#allocation8 + $0x60] sm:$0xff]
    %v500 = vld [vmem:[#allocation8 + $0x68] sm:$0xf]
    %v501 = vld [vmem:[#allocation8 + $0x6c] sm:$0xff]
    %v502 = vld [vmem:[#allocation8 + $0x74] sm:$0xff]
    %v503 = vld [vmem:[#allocation8 + $0x7c] sm:$0xff]
    %v504 = vld [vmem:[#allocation8 + $0x84] sm:$0xff]
    %v505 = vld [vmem:[#allocation8 + $0x8c] sm:$0xf]
    %v506 = vld [vmem:[#allocation8 + $0x90] sm:$0xff]
    %v507 = vld [vmem:[#allocation8 + $0x98] sm:$0xff]
    %v508 = vld [vmem:[#allocation8 + $0xa0] sm:$0xff]
    %v509 = vld [vmem:[#allocation8 + $0xa8] sm:$0xff]
    %v510 = vld [vmem:[#allocation8 + $0xb0] sm:$0xf]
    %v511 = vld [vmem:[#allocation8 + $0xb4] sm:$0xff]
    %v512 = vld [vmem:[#allocation8 + $0xbc] sm:$0xff]
    %v513 = vld [vmem:[#allocation8 + $0xc4] sm:$0xff]
    %v514 = vld [vmem:[#allocation8 + $0xcc] sm:$0xff]
    %v515 = vld [vmem:[#allocation8 + $0xd4] sm:$0xf]
    %v516 = vld [vmem:[#allocation8 + $0xd8] sm:$0xff]
    %v517 = vld [vmem:[#allocation8 + $0xe0] sm:$0xff]
    %v518 = vld [vmem:[#allocation8 + $0xe8] sm:$0xff]
    %v519 = vld [vmem:[#allocation8 + $0xf0] sm:$0xff]
    %v520 = vld [vmem:[#allocation8 + $0xf8] sm:$0xf]
    %v521 = vld [vmem:[#allocation8 + $0xfc] sm:$0xff]
    %v522 = vld [vmem:[#allocation8 + $0x104] sm:$0xff]
    %v523 = vld [vmem:[#allocation8 + $0x10c] sm:$0xff]
    %v524 = vld [vmem:[#allocation8 + $0x114] sm:$0xff]
    %v525 = vld [vmem:[#allocation8 + $0x11c] sm:$0xf]
    %v526 = vld [vmem:[#allocation8 + $0x120] sm:$0xff]
    %v527 = vld [vmem:[#allocation8 + $0x128] sm:$0xff]
    %v528 = vld [vmem:[#allocation8 + $0x130] sm:$0xff]
    %v529 = vld [vmem:[#allocation8 + $0x138] sm:$0xff]
    %v530 = vld [vmem:[#allocation8 + $0x140] sm:$0xf]
    %v531 = vld [vmem:[#allocation8 + $0x144] sm:$0xff]
    %v532 = vld [vmem:[#allocation8 + $0x14c] sm:$0xff]
    %v533 = vld [vmem:[#allocation8 + $0x154] sm:$0xff]
    %v534 = vld [vmem:[#allocation8 + $0x15c] sm:$0xff]
    %v535 = vld [vmem:[#allocation8 + $0x164] sm:$0xf]
    %v536 = vld [vmem:[#allocation8 + $0x168] sm:$0xff]
    %v537 = vld [vmem:[#allocation8 + $0x170] sm:$0xff]
    %v538 = vld [vmem:[#allocation8 + $0x178] sm:$0xff]
    %v539 = vld [vmem:[#allocation8 + $0x180] sm:$0xff]
    %v540 = vld [vmem:[#allocation8 + $0x188] sm:$0xf]
    %v541 = vld [vmem:[#allocation8 + $0x18c] sm:$0xff]
    %v542 = vld [vmem:[#allocation8 + $0x194] sm:$0xff]
    %v543 = vld [vmem:[#allocation8 + $0x19c] sm:$0xff]
    %v544 = vld [vmem:[#allocation8 + $0x1a4] sm:$0xff]
    %v545 = vld [vmem:[#allocation8 + $0x1ac] sm:$0xf]
    %v546 = vld [vmem:[#allocation8 + $0x1b0] sm:$0xff]
    %v547 = vld [vmem:[#allocation8 + $0x1b8] sm:$0xff]
    %v548 = vld [vmem:[#allocation8 + $0x1c0] sm:$0xff]
    %v549 = vld [vmem:[#allocation8 + $0x1c8] sm:$0xff]
    %v550 = vld [vmem:[#allocation8 + $0x1d0] sm:$0xf]
    %v551 = vld [vmem:[#allocation8 + $0x1d4] sm:$0xff]
    %v552 = vld [vmem:[#allocation8 + $0x1dc] sm:$0xff]
    %v553 = vld [vmem:[#allocation8 + $0x1e4] sm:$0xff]
    %v554 = vld [vmem:[#allocation8 + $0x1ec] sm:$0xff]
    %v555 = vld [vmem:[#allocation8 + $0x1f4] sm:$0xf]
    %v556 = vld [vmem:[#allocation8 + $0x1f8] sm:$0xff]
    %v557 = vld [vmem:[#allocation8 + $0x200] sm:$0xff]
    %v558 = vld [vmem:[#allocation8 + $0x208] sm:$0xff]
    %v559 = vld [vmem:[#allocation8 + $0x210] sm:$0xff]
    %v560 = vld [vmem:[#allocation8 + $0x218] sm:$0xf]
    %v561 = vld [vmem:[#allocation8 + $0x21c] sm:$0xff]
    %v562 = vld [vmem:[#allocation8 + $0x224] sm:$0xff]
    %v563 = vld [vmem:[#allocation8 + $0x22c] sm:$0xff]
    %v564 = vld [vmem:[#allocation8 + $0x234] sm:$0xff]
    %v565 = vld [vmem:[#allocation8 + $0x23c] sm:$0xf]
    %v566 = vld [vmem:[#allocation8 + $0x240] sm:$0xff]
    %v567 = vld [vmem:[#allocation8 + $0x248] sm:$0xff]
    %v568 = vld [vmem:[#allocation8 + $0x250] sm:$0xff]
    %v569 = vld [vmem:[#allocation8 + $0x258] sm:$0xff]
    %v570 = vld [vmem:[#allocation8 + $0x260] sm:$0xf]
    %v571 = vld [vmem:[#allocation8 + $0x264] sm:$0xff]
    %v572 = vld [vmem:[#allocation8 + $0x26c] sm:$0xff]
    %v573 = vld [vmem:[#allocation8 + $0x274] sm:$0xff]
    %v574 = vld [vmem:[#allocation8 + $0x27c] sm:$0xff]
    %v575 = vld [vmem:[#allocation8 + $0x284] sm:$0xf]
    %v576 = vld [vmem:[#allocation8 + $0x288] sm:$0xff]
    %v577 = vld [vmem:[#allocation8 + $0x290] sm:$0xff]
    %v578 = vld [vmem:[#allocation8 + $0x298] sm:$0xff]
    %v579 = vld [vmem:[#allocation8 + $0x2a0] sm:$0xff]
    %v580 = vld [vmem:[#allocation8 + $0x2a8] sm:$0xf]
    %v581 = vld [vmem:[#allocation8 + $0x2ac] sm:$0xff]
    %v582 = vld [vmem:[#allocation8 + $0x2b4] sm:$0xff]
    %v583 = vld [vmem:[#allocation8 + $0x2bc] sm:$0xff]
    %v584 = vld [vmem:[#allocation8 + $0x2c4] sm:$0xff]
    %v585 = vld [vmem:[#allocation8 + $0x2cc] sm:$0xf]
    %v586 = vld [vmem:[#allocation8 + $0x2d0] sm:$0xff]
    %v587 = vld [vmem:[#allocation8 + $0x2d8] sm:$0xff]
    %v588 = vld [vmem:[#allocation8 + $0x2e0] sm:$0xff]
    %v589 = vld [vmem:[#allocation8 + $0x2e8] sm:$0xff]
    %v590 = vld [vmem:[#allocation8 + $0x2f0] sm:$0xf]
    %v591 = vld [vmem:[#allocation8 + $0x2f4] sm:$0xff]
    %v592 = vld [vmem:[#allocation8 + $0x2fc] sm:$0xff]
    %v593 = vld [vmem:[#allocation8 + $0x304] sm:$0xff]
    %v594 = vld [vmem:[#allocation8 + $0x30c] sm:$0xff]
    %v595 = vld [vmem:[#allocation8 + $0x314] sm:$0xf]
    %v596 = vld [vmem:[#allocation8 + $0x318] sm:$0xff]
    %v597 = vld [vmem:[#allocation8 + $0x320] sm:$0xff]
    %v598 = vld [vmem:[#allocation8 + $0x328] sm:$0xff]
    %v599 = vld [vmem:[#allocation8 + $0x330] sm:$0xff]
    %v600 = vld [vmem:[#allocation8 + $0x338] sm:$0xf]
    %v601 = vld [vmem:[#allocation8 + $0x33c] sm:$0xff]
    %v602 = vld [vmem:[#allocation8 + $0x344] sm:$0xff]
    %v603 = vld [vmem:[#allocation8 + $0x34c] sm:$0xff]
    %v604 = vld [vmem:[#allocation8 + $0x354] sm:$0xff]
    %v605 = vld [vmem:[#allocation8 + $0x35c] sm:$0xf]
    %v606 = vld [vmem:[#allocation8 + $0x360] sm:$0xff]
    %v607 = vld [vmem:[#allocation8 + $0x368] sm:$0xff]
    %v608 = vld [vmem:[#allocation8 + $0x370] sm:$0xff]
    %v609 = vld [vmem:[#allocation8 + $0x378] sm:$0xff]
    %v610 = vld [vmem:[#allocation8 + $0x380] sm:$0xf]
    %v611 = vld [vmem:[#allocation8 + $0x384] sm:$0xff]
    %v612 = vld [vmem:[#allocation8 + $0x38c] sm:$0xff]
    %v613 = vld [vmem:[#allocation8 + $0x394] sm:$0xff]
    %v614 = vld [vmem:[#allocation8 + $0x39c] sm:$0xff]
    %v615 = vld [vmem:[#allocation8 + $0x3a4] sm:$0xf]
    %v616 = vld [vmem:[#allocation8 + $0x3a8] sm:$0xff]
    %v617 = vld [vmem:[#allocation8 + $0x3b0] sm:$0xff]
    %v618 = vld [vmem:[#allocation8 + $0x3b8] sm:$0xff]
    %v619 = vld [vmem:[#allocation8 + $0x3c0] sm:$0xff]
    %v620 = vld [vmem:[#allocation8 + $0x3c8] sm:$0xf]
    %v621 = vld [vmem:[#allocation8 + $0x3cc] sm:$0xff]
    %v622 = vld [vmem:[#allocation8 + $0x3d4] sm:$0xff]
    %v623 = vld [vmem:[#allocation8 + $0x3dc] sm:$0xff]
    %v624 = vld [vmem:[#allocation8 + $0x3e4] sm:$0xff]
    %v625 = vld [vmem:[#allocation8 + $0x3ec] sm:$0xf]
    %v626 = vld [vmem:[#allocation8 + $0x3f0] sm:$0xff]
    %v627 = vld [vmem:[#allocation8 + $0x3f8] sm:$0xff]
    %v628 = vld [vmem:[#allocation8 + $0x400] sm:$0xff]
    %v629 = vld [vmem:[#allocation8 + $0x408] sm:$0xff]
    %v630 = vld [vmem:[#allocation8 + $0x410] sm:$0xf]
    %v631 = vld [vmem:[#allocation8 + $0x414] sm:$0xff]
    %v632 = vld [vmem:[#allocation8 + $0x41c] sm:$0xff]
    %v633 = vld [vmem:[#allocation8 + $0x424] sm:$0xff]
    %v634 = vld [vmem:[#allocation8 + $0x42c] sm:$0xff]
    %v635 = vld [vmem:[#allocation8 + $0x434] sm:$0xf]
    %v636 = vld [vmem:[#allocation8 + $0x438] sm:$0xff]
    %v637 = vld [vmem:[#allocation8 + $0x440] sm:$0xff]
    %v638 = vld [vmem:[#allocation8 + $0x448] sm:$0xff]
    %v639 = vld [vmem:[#allocation8 + $0x450] sm:$0xff]
    %v640 = vld [vmem:[#allocation8 + $0x458] sm:$0xf]
    %v641 = vld [vmem:[#allocation8 + $0x45c] sm:$0xff]
    %v642 = vld [vmem:[#allocation8 + $0x464] sm:$0xff]
    %v643 = vld [vmem:[#allocation8 + $0x46c] sm:$0xff]
    %v644 = vld [vmem:[#allocation8 + $0x474] sm:$0xff]
    %v645 = vld [vmem:[#allocation8 + $0x47c] sm:$0xf]
    %v646 = vld [vmem:[#allocation8 + $0x480] sm:$0xff]
    %v647 = vld [vmem:[#allocation8 + $0x488] sm:$0xff]
    %v648 = vld [vmem:[#allocation8 + $0x490] sm:$0xff]
    %v649 = vld [vmem:[#allocation8 + $0x498] sm:$0xff]
    %v650 = vld [vmem:[#allocation8 + $0x4a0] sm:$0xf]
    %v651 = vld [vmem:[#allocation8 + $0x4a4] sm:$0xff]
    %v652 = vld [vmem:[#allocation8 + $0x4ac] sm:$0xff]
    %v653 = vld [vmem:[#allocation8 + $0x4b4] sm:$0xff]
    %v654 = vld [vmem:[#allocation8 + $0x4bc] sm:$0xff]
    %v655 = vld [vmem:[#allocation8 + $0x4c4] sm:$0xf]
    %v656 = vld [vmem:[#allocation8 + $0x4c8] sm:$0xff]
    %v657 = vld [vmem:[#allocation8 + $0x4d0] sm:$0xff]
    %v658 = vld [vmem:[#allocation8 + $0x4d8] sm:$0xff]
    %v659 = vld [vmem:[#allocation8 + $0x4e0] sm:$0xff]
    %v660 = vld [vmem:[#allocation8 + $0x4e8] sm:$0xf]
    %v661 = vld [vmem:[#allocation8 + $0x4ec] sm:$0xff]
    %v662 = vld [vmem:[#allocation8 + $0x4f4] sm:$0xff]
    %v663 = vld [vmem:[#allocation8 + $0x4fc] sm:$0xff]
    %v664 = vld [vmem:[#allocation8 + $0x504] sm:$0xff]
    %v665 = vld [vmem:[#allocation8 + $0x50c] sm:$0xf]
    %v666 = vld [vmem:[#allocation8 + $0x510] sm:$0xff]
    %v667 = vld [vmem:[#allocation8 + $0x518] sm:$0xff]
    %v668 = vld [vmem:[#allocation8 + $0x520] sm:$0xff]
    %v669 = vld [vmem:[#allocation8 + $0x528] sm:$0xff]
    %v670 = vld [vmem:[#allocation8 + $0x530] sm:$0xf]
    %v671 = vld [vmem:[#allocation8 + $0x534] sm:$0xff]
    %v672 = vld [vmem:[#allocation8 + $0x53c] sm:$0xff]
    %v673 = vld [vmem:[#allocation8 + $0x544] sm:$0xff]
    %v674 = vld [vmem:[#allocation8 + $0x54c] sm:$0xff]
    %v675 = vld [vmem:[#allocation8 + $0x554] sm:$0xf]
    %v676 = vld [vmem:[#allocation8 + $0x558] sm:$0xff]
    %v677 = vld [vmem:[#allocation8 + $0x560] sm:$0xff]
    %v678 = vld [vmem:[#allocation8 + $0x568] sm:$0xff]
    %v679 = vld [vmem:[#allocation8 + $0x570] sm:$0xff]
    %v680 = vld [vmem:[#allocation8 + $0x578] sm:$0xf]
    %v681 = vld [vmem:[#allocation8 + $0x57c] sm:$0xff]
    %v682 = vld [vmem:[#allocation8 + $0x584] sm:$0xff]
    %v683 = vld [vmem:[#allocation8 + $0x58c] sm:$0xff]
    %v684 = vld [vmem:[#allocation8 + $0x594] sm:$0xff]
    %v685 = vld [vmem:[#allocation8 + $0x59c] sm:$0xf]
    %v686 = vld [vmem:[#allocation8 + $0x5a0] sm:$0xff]
    %v687 = vld [vmem:[#allocation8 + $0x5a8] sm:$0xff]
    %v688 = vld [vmem:[#allocation8 + $0x5b0] sm:$0xff]
    %v689 = vld [vmem:[#allocation8 + $0x5b8] sm:$0xff]
    %v690 = vld [vmem:[#allocation8 + $0x5c0] sm:$0xf]
    %v691 = vld [vmem:[#allocation8 + $0x5c4] sm:$0xff]
    %v692 = vld [vmem:[#allocation8 + $0x5cc] sm:$0xff]
    %v693 = vld [vmem:[#allocation8 + $0x5d4] sm:$0xff]
    %v694 = vld [vmem:[#allocation8 + $0x5dc] sm:$0xff]
    %v695 = vld [vmem:[#allocation8 + $0x5e4] sm:$0xf]
    %v696 = vld [vmem:[#allocation8 + $0x5e8] sm:$0xff]
    %v697 = vld [vmem:[#allocation8 + $0x5f0] sm:$0xff]
    %v698 = vld [vmem:[#allocation8 + $0x5f8] sm:$0xff]
    %v699 = vld [vmem:[#allocation8 + $0x600] sm:$0xff]
    %v700 = vld [vmem:[#allocation8 + $0x608] sm:$0xf]
    %v701 = vld [vmem:[#allocation8 + $0x60c] sm:$0xff]
    %v702 = vld [vmem:[#allocation8 + $0x614] sm:$0xff]
    %v703 = vld [vmem:[#allocation8 + $0x61c] sm:$0xff]
    %v704 = vld [vmem:[#allocation8 + $0x624] sm:$0xff]
    %v705 = vld [vmem:[#allocation8 + $0x62c] sm:$0xf]
    %v706 = vld [vmem:[#allocation8 + $0x630] sm:$0xff]
    %v707 = vld [vmem:[#allocation8 + $0x638] sm:$0xff]
    %v708 = vld [vmem:[#allocation8 + $0x640] sm:$0xff]
    %v709 = vld [vmem:[#allocation8 + $0x648] sm:$0xff]
    %v710 = vld [vmem:[#allocation8 + $0x650] sm:$0xf]
    %v711 = vld [vmem:[#allocation8 + $0x654] sm:$0xff]
    %v712 = vld [vmem:[#allocation8 + $0x65c] sm:$0xff]
    %v713 = vld [vmem:[#allocation8 + $0x664] sm:$0xff]
    %v714 = vld [vmem:[#allocation8 + $0x66c] sm:$0xff]
    %v715 = vld [vmem:[#allocation8 + $0x674] sm:$0xf]
    %v716 = vld [vmem:[#allocation8 + $0x678] sm:$0xff]
    %v717 = vld [vmem:[#allocation8 + $0x680] sm:$0xff]
    %v718 = vld [vmem:[#allocation8 + $0x688] sm:$0xff]
    %v719 = vld [vmem:[#allocation8 + $0x690] sm:$0xff]
    %v720 = vld [vmem:[#allocation8 + $0x698] sm:$0xf]
    %v721 = vld [vmem:[#allocation8 + $0x69c] sm:$0xff]
    %v722 = vld [vmem:[#allocation8 + $0x6a4] sm:$0xff]
    %v723 = vld [vmem:[#allocation8 + $0x6ac] sm:$0xff]
    %v724 = vld [vmem:[#allocation8 + $0x6b4] sm:$0xff]
    %v725 = vld [vmem:[#allocation8 + $0x6bc] sm:$0xf]
    %v726 = vld [vmem:[#allocation8 + $0x6c0] sm:$0xff]
    %v727 = vld [vmem:[#allocation8 + $0x6c8] sm:$0xff]
    %v728 = vld [vmem:[#allocation8 + $0x6d0] sm:$0xff]
    %v729 = vld [vmem:[#allocation8 + $0x6d8] sm:$0xff]
    %v730 = vld [vmem:[#allocation8 + $0x6e0] sm:$0xf]
    %v731 = vld [vmem:[#allocation8 + $0x6e4] sm:$0xff]
    %v732 = vld [vmem:[#allocation8 + $0x6ec] sm:$0xff]
    %v733 = vld [vmem:[#allocation8 + $0x6f4] sm:$0xff]
    %v734 = vld [vmem:[#allocation8 + $0x6fc] sm:$0xff]
    %v735 = vld [vmem:[#allocation8 + $0x704] sm:$0xf]
    %v736 = vld [vmem:[#allocation8 + $0x708] sm:$0xff]
    %v737 = vld [vmem:[#allocation8 + $0x710] sm:$0xff]
    %v738 = vld [vmem:[#allocation8 + $0x718] sm:$0xff]
    %v739 = vld [vmem:[#allocation8 + $0x720] sm:$0xff]
    %v740 = vld [vmem:[#allocation8 + $0x728] sm:$0xf]
    %v741 = vld [vmem:[#allocation8 + $0x72c] sm:$0xff]
    %v742 = vld [vmem:[#allocation8 + $0x734] sm:$0xff]
    %v743 = vld [vmem:[#allocation8 + $0x73c] sm:$0xff]
    %v744 = vld [vmem:[#allocation8 + $0x744] sm:$0xff]
    %v745 = vld [vmem:[#allocation8 + $0x74c] sm:$0xf]
    %v746 = vld [vmem:[#allocation8 + $0x750] sm:$0xff]
    %v747 = vld [vmem:[#allocation8 + $0x758] sm:$0xff]
    %v748 = vld [vmem:[#allocation8 + $0x760] sm:$0xff]
    %v749 = vld [vmem:[#allocation8 + $0x768] sm:$0xff]
    %v750 = vld [vmem:[#allocation8 + $0x770] sm:$0xf]
    %v751 = vld [vmem:[#allocation8 + $0x774] sm:$0xff]
    %v752 = vld [vmem:[#allocation8 + $0x77c] sm:$0xff]
    %v753 = vld [vmem:[#allocation8 + $0x784] sm:$0xff]
    %v754 = vld [vmem:[#allocation8 + $0x78c] sm:$0xff]
    %v755 = vld [vmem:[#allocation8 + $0x794] sm:$0xf]
    %v756 = vld [vmem:[#allocation8 + $0x798] sm:$0xff]
    %v757 = vld [vmem:[#allocation8 + $0x7a0] sm:$0xff]
    %v758 = vld [vmem:[#allocation8 + $0x7a8] sm:$0xff]
    %v759 = vld [vmem:[#allocation8 + $0x7b0] sm:$0xff]
    %v760 = vld [vmem:[#allocation8 + $0x7b8] sm:$0xf]
    %v761 = vld [vmem:[#allocation8 + $0x7bc] sm:$0xff]
    %v762 = vld [vmem:[#allocation8 + $0x7c4] sm:$0xff]
    %v763 = vld [vmem:[#allocation8 + $0x7cc] sm:$0xff]
    %v764 = vld [vmem:[#allocation8 + $0x7d4] sm:$0xff]
    %v765 = vld [vmem:[#allocation8 + $0x7dc] sm:$0xf]
    %v766 = vld [vmem:[#allocation8 + $0x7e0] sm:$0xff]
    %v767 = vld [vmem:[#allocation8 + $0x7e8] sm:$0xff]
    %v768 = vld [vmem:[#allocation8 + $0x7f0] sm:$0xff]
    %v769 = vld [vmem:[#allocation8 + $0x7f8] sm:$0xff]
    %v770 = vld [vmem:[#allocation8 + $0x800] sm:$0xf]
    %v771 = vld [vmem:[#allocation8 + $0x804] sm:$0xff]
    %v772 = vld [vmem:[#allocation8 + $0x80c] sm:$0xff]
    %v773 = vld [vmem:[#allocation8 + $0x814] sm:$0xff]
    %v774 = vld [vmem:[#allocation8 + $0x81c] sm:$0xff]
    %v775 = vld [vmem:[#allocation8 + $0x824] sm:$0xf]
    %v776 = vld [vmem:[#allocation8 + $0x828] sm:$0xff]
    %v777 = vld [vmem:[#allocation8 + $0x830] sm:$0xff]
    %v778 = vld [vmem:[#allocation8 + $0x838] sm:$0xff]
    %v779 = vld [vmem:[#allocation8 + $0x840] sm:$0xff]
    %v780 = vld [vmem:[#allocation8 + $0x848] sm:$0xf]
    %v781 = vld [vmem:[#allocation8 + $0x84c] sm:$0xff]
    %v782 = vld [vmem:[#allocation8 + $0x854] sm:$0xff]
    %v783 = vld [vmem:[#allocation8 + $0x85c] sm:$0xff]
    %v784 = vld [vmem:[#allocation8 + $0x864] sm:$0xff]
    %v785 = vld [vmem:[#allocation8 + $0x86c] sm:$0xf]
    %v786 = vld [vmem:[#allocation8 + $0x870] sm:$0xff]
    %v787 = vld [vmem:[#allocation8 + $0x878] sm:$0xff]
    %v788 = vld [vmem:[#allocation8 + $0x880] sm:$0xff]
    %v789 = vld [vmem:[#allocation8 + $0x888] sm:$0xff]
    %v790 = vld [vmem:[#allocation8 + $0x890] sm:$0xf]
    %v791 = vld [vmem:[#allocation8 + $0x894] sm:$0xff]
    %v792 = vld [vmem:[#allocation8 + $0x89c] sm:$0xff]
    %v793 = vld [vmem:[#allocation8 + $0x8a4] sm:$0xff]
    %v794 = vld [vmem:[#allocation8 + $0x8ac] sm:$0xff]
    %v795 = vld [vmem:[#allocation8 + $0x8b4] sm:$0xf]
    %v796 = vld [vmem:[#allocation8 + $0x8b8] sm:$0xff]
    %v797 = vld [vmem:[#allocation8 + $0x8c0] sm:$0xff]
    %v798 = vld [vmem:[#allocation8 + $0x8c8] sm:$0xff]
    %v799 = vld [vmem:[#allocation8 + $0x8d0] sm:$0xff]
    %v800 = vld [vmem:[#allocation8 + $0x8d8] sm:$0xf]
    %v801 = vld [vmem:[#allocation8 + $0x8dc] sm:$0xff]
    %v802 = vld [vmem:[#allocation8 + $0x8e4] sm:$0xff]
    %v803 = vld [vmem:[#allocation8 + $0x8ec] sm:$0xff]
    %v804 = vld [vmem:[#allocation8 + $0x8f4] sm:$0xff]
    %v805 = vld [vmem:[#allocation8 + $0x8fc] sm:$0xf]
    %v1126 = vunpack.c.l.b16 %v486
    %v1127 = vunpack.c.h.b16 %v486
    %v1128 = vunpack.c.l.b16 %v487
    %v1129 = vunpack.c.h.b16 %v487
    %v1130 = vunpack.c.l.b16 %v488
    %v1131 = vunpack.c.h.b16 %v488
    %v1132 = vunpack.c.l.b16 %v489
    %v1133 = vunpack.c.h.b16 %v489
    %v1134 = vunpack.c.l.b16 %v490
    %v1135 = vunpack.c.l.b16 %v491
    %v1136 = vunpack.c.h.b16 %v491
    %v1137 = vunpack.c.l.b16 %v492
    %v1138 = vunpack.c.h.b16 %v492
    %v1139 = vunpack.c.l.b16 %v493
    %v1140 = vunpack.c.h.b16 %v493
    %v1141 = vunpack.c.l.b16 %v494
    %v1142 = vunpack.c.h.b16 %v494
    %v1143 = vunpack.c.l.b16 %v495
    %v1144 = vunpack.c.l.b16 %v496
    %v1145 = vunpack.c.h.b16 %v496
    %v1146 = vunpack.c.l.b16 %v497
    %v1147 = vunpack.c.h.b16 %v497
    %v1148 = vunpack.c.l.b16 %v498
    %v1149 = vunpack.c.h.b16 %v498
    %v1150 = vunpack.c.l.b16 %v499
    %v1151 = vunpack.c.h.b16 %v499
    %v1152 = vunpack.c.l.b16 %v500
    %v1153 = vunpack.c.l.b16 %v501
    %v1154 = vunpack.c.h.b16 %v501
    %v1155 = vunpack.c.l.b16 %v502
    %v1156 = vunpack.c.h.b16 %v502
    %v1157 = vunpack.c.l.b16 %v503
    %v1158 = vunpack.c.h.b16 %v503
    %v1159 = vunpack.c.l.b16 %v504
    %v1160 = vunpack.c.h.b16 %v504
    %v1161 = vunpack.c.l.b16 %v505
    %v1162 = vunpack.c.l.b16 %v506
    %v1163 = vunpack.c.h.b16 %v506
    %v1164 = vunpack.c.l.b16 %v507
    %v1165 = vunpack.c.h.b16 %v507
    %v1166 = vunpack.c.l.b16 %v508
    %v1167 = vunpack.c.h.b16 %v508
    %v1168 = vunpack.c.l.b16 %v509
    %v1169 = vunpack.c.h.b16 %v509
    %v1170 = vunpack.c.l.b16 %v510
    %v1171 = vunpack.c.l.b16 %v511
    %v1172 = vunpack.c.h.b16 %v511
    %v1173 = vunpack.c.l.b16 %v512
    %v1174 = vunpack.c.h.b16 %v512
    %v1175 = vunpack.c.l.b16 %v513
    %v1176 = vunpack.c.h.b16 %v513
    %v1177 = vunpack.c.l.b16 %v514
    %v1178 = vunpack.c.h.b16 %v514
    %v1179 = vunpack.c.l.b16 %v515
    %v1180 = vunpack.c.l.b16 %v516
    %v1181 = vunpack.c.h.b16 %v516
    %v1182 = vunpack.c.l.b16 %v517
    %v1183 = vunpack.c.h.b16 %v517
    %v1184 = vunpack.c.l.b16 %v518
    %v1185 = vunpack.c.h.b16 %v518
    %v1186 = vunpack.c.l.b16 %v519
    %v1187 = vunpack.c.h.b16 %v519
    %v1188 = vunpack.c.l.b16 %v520
    %v1189 = vunpack.c.l.b16 %v521
    %v1190 = vunpack.c.h.b16 %v521
    %v1191 = vunpack.c.l.b16 %v522
    %v1192 = vunpack.c.h.b16 %v522
    %v1193 = vunpack.c.l.b16 %v523
    %v1194 = vunpack.c.h.b16 %v523
    %v1195 = vunpack.c.l.b16 %v524
    %v1196 = vunpack.c.h.b16 %v524
    %v1197 = vunpack.c.l.b16 %v525
    %v1198 = vunpack.c.l.b16 %v526
    %v1199 = vunpack.c.h.b16 %v526
    %v1200 = vunpack.c.l.b16 %v527
    %v1201 = vunpack.c.h.b16 %v527
    %v1202 = vunpack.c.l.b16 %v528
    %v1203 = vunpack.c.h.b16 %v528
    %v1204 = vunpack.c.l.b16 %v529
    %v1205 = vunpack.c.h.b16 %v529
    %v1206 = vunpack.c.l.b16 %v530
    %v1207 = vunpack.c.l.b16 %v531
    %v1208 = vunpack.c.h.b16 %v531
    %v1209 = vunpack.c.l.b16 %v532
    %v1210 = vunpack.c.h.b16 %v532
    %v1211 = vunpack.c.l.b16 %v533
    %v1212 = vunpack.c.h.b16 %v533
    %v1213 = vunpack.c.l.b16 %v534
    %v1214 = vunpack.c.h.b16 %v534
    %v1215 = vunpack.c.l.b16 %v535
    %v1216 = vunpack.c.l.b16 %v536
    %v1217 = vunpack.c.h.b16 %v536
    %v1218 = vunpack.c.l.b16 %v537
    %v1219 = vunpack.c.h.b16 %v537
    %v1220 = vunpack.c.l.b16 %v538
    %v1221 = vunpack.c.h.b16 %v538
    %v1222 = vunpack.c.l.b16 %v539
    %v1223 = vunpack.c.h.b16 %v539
    %v1224 = vunpack.c.l.b16 %v540
    %v1225 = vunpack.c.l.b16 %v541
    %v1226 = vunpack.c.h.b16 %v541
    %v1227 = vunpack.c.l.b16 %v542
    %v1228 = vunpack.c.h.b16 %v542
    %v1229 = vunpack.c.l.b16 %v543
    %v1230 = vunpack.c.h.b16 %v543
    %v1231 = vunpack.c.l.b16 %v544
    %v1232 = vunpack.c.h.b16 %v544
    %v1233 = vunpack.c.l.b16 %v545
    %v1234 = vunpack.c.l.b16 %v546
    %v1235 = vunpack.c.h.b16 %v546
    %v1236 = vunpack.c.l.b16 %v547
    %v1237 = vunpack.c.h.b16 %v547
    %v1238 = vunpack.c.l.b16 %v548
    %v1239 = vunpack.c.h.b16 %v548
    %v1240 = vunpack.c.l.b16 %v549
    %v1241 = vunpack.c.h.b16 %v549
    %v1242 = vunpack.c.l.b16 %v550
    %v1243 = vunpack.c.l.b16 %v551
    %v1244 = vunpack.c.h.b16 %v551
    %v1245 = vunpack.c.l.b16 %v552
    %v1246 = vunpack.c.h.b16 %v552
    %v1247 = vunpack.c.l.b16 %v553
    %v1248 = vunpack.c.h.b16 %v553
    %v1249 = vunpack.c.l.b16 %v554
    %v1250 = vunpack.c.h.b16 %v554
    %v1251 = vunpack.c.l.b16 %v555
    %v1252 = vunpack.c.l.b16 %v556
    %v1253 = vunpack.c.h.b16 %v556
    %v1254 = vunpack.c.l.b16 %v557
    %v1255 = vunpack.c.h.b16 %v557
    %v1256 = vunpack.c.l.b16 %v558
    %v1257 = vunpack.c.h.b16 %v558
    %v1258 = vunpack.c.l.b16 %v559
    %v1259 = vunpack.c.h.b16 %v559
    %v1260 = vunpack.c.l.b16 %v560
    %v1261 = vunpack.c.l.b16 %v561
    %v1262 = vunpack.c.h.b16 %v561
    %v1263 = vunpack.c.l.b16 %v562
    %v1264 = vunpack.c.h.b16 %v562
    %v1265 = vunpack.c.l.b16 %v563
    %v1266 = vunpack.c.h.b16 %v563
    %v1267 = vunpack.c.l.b16 %v564
    %v1268 = vunpack.c.h.b16 %v564
    %v1269 = vunpack.c.l.b16 %v565
    %v1270 = vunpack.c.l.b16 %v566
    %v1271 = vunpack.c.h.b16 %v566
    %v1272 = vunpack.c.l.b16 %v567
    %v1273 = vunpack.c.h.b16 %v567
    %v1274 = vunpack.c.l.b16 %v568
    %v1275 = vunpack.c.h.b16 %v568
    %v1276 = vunpack.c.l.b16 %v569
    %v1277 = vunpack.c.h.b16 %v569
    %v1278 = vunpack.c.l.b16 %v570
    %v1279 = vunpack.c.l.b16 %v571
    %v1280 = vunpack.c.h.b16 %v571
    %v1281 = vunpack.c.l.b16 %v572
    %v1282 = vunpack.c.h.b16 %v572
    %v1283 = vunpack.c.l.b16 %v573
    %v1284 = vunpack.c.h.b16 %v573
    %v1285 = vunpack.c.l.b16 %v574
    %v1286 = vunpack.c.h.b16 %v574
    %v1287 = vunpack.c.l.b16 %v575
    %v1288 = vunpack.c.l.b16 %v576
    %v1289 = vunpack.c.h.b16 %v576
    %v1290 = vunpack.c.l.b16 %v577
    %v1291 = vunpack.c.h.b16 %v577
    %v1292 = vunpack.c.l.b16 %v578
    %v1293 = vunpack.c.h.b16 %v578
    %v1294 = vunpack.c.l.b16 %v579
    %v1295 = vunpack.c.h.b16 %v579
    %v1296 = vunpack.c.l.b16 %v580
    %v1297 = vunpack.c.l.b16 %v581
    %v1298 = vunpack.c.h.b16 %v581
    %v1299 = vunpack.c.l.b16 %v582
    %v1300 = vunpack.c.h.b16 %v582
    %v1301 = vunpack.c.l.b16 %v583
    %v1302 = vunpack.c.h.b16 %v583
    %v1303 = vunpack.c.l.b16 %v584
    %v1304 = vunpack.c.h.b16 %v584
    %v1305 = vunpack.c.l.b16 %v585
    %v1306 = vunpack.c.l.b16 %v586
    %v1307 = vunpack.c.h.b16 %v586
    %v1308 = vunpack.c.l.b16 %v587
    %v1309 = vunpack.c.h.b16 %v587
    %v1310 = vunpack.c.l.b16 %v588
    %v1311 = vunpack.c.h.b16 %v588
    %v1312 = vunpack.c.l.b16 %v589
    %v1313 = vunpack.c.h.b16 %v589
    %v1314 = vunpack.c.l.b16 %v590
    %v1315 = vunpack.c.l.b16 %v591
    %v1316 = vunpack.c.h.b16 %v591
    %v1317 = vunpack.c.l.b16 %v592
    %v1318 = vunpack.c.h.b16 %v592
    %v1319 = vunpack.c.l.b16 %v593
    %v1320 = vunpack.c.h.b16 %v593
    %v1321 = vunpack.c.l.b16 %v594
    %v1322 = vunpack.c.h.b16 %v594
    %v1323 = vunpack.c.l.b16 %v595
    %v1324 = vunpack.c.l.b16 %v596
    %v1325 = vunpack.c.h.b16 %v596
    %v1326 = vunpack.c.l.b16 %v597
    %v1327 = vunpack.c.h.b16 %v597
    %v1328 = vunpack.c.l.b16 %v598
    %v1329 = vunpack.c.h.b16 %v598
    %v1330 = vunpack.c.l.b16 %v599
    %v1331 = vunpack.c.h.b16 %v599
    %v1332 = vunpack.c.l.b16 %v600
    %v1333 = vunpack.c.l.b16 %v601
    %v1334 = vunpack.c.h.b16 %v601
    %v1335 = vunpack.c.l.b16 %v602
    %v1336 = vunpack.c.h.b16 %v602
    %v1337 = vunpack.c.l.b16 %v603
    %v1338 = vunpack.c.h.b16 %v603
    %v1339 = vunpack.c.l.b16 %v604
    %v1340 = vunpack.c.h.b16 %v604
    %v1341 = vunpack.c.l.b16 %v605
    %v1342 = vunpack.c.l.b16 %v606
    %v1343 = vunpack.c.h.b16 %v606
    %v1344 = vunpack.c.l.b16 %v607
    %v1345 = vunpack.c.h.b16 %v607
    %v1346 = vunpack.c.l.b16 %v608
    %v1347 = vunpack.c.h.b16 %v608
    %v1348 = vunpack.c.l.b16 %v609
    %v1349 = vunpack.c.h.b16 %v609
    %v1350 = vunpack.c.l.b16 %v610
    %v1351 = vunpack.c.l.b16 %v611
    %v1352 = vunpack.c.h.b16 %v611
    %v1353 = vunpack.c.l.b16 %v612
    %v1354 = vunpack.c.h.b16 %v612
    %v1355 = vunpack.c.l.b16 %v613
    %v1356 = vunpack.c.h.b16 %v613
    %v1357 = vunpack.c.l.b16 %v614
    %v1358 = vunpack.c.h.b16 %v614
    %v1359 = vunpack.c.l.b16 %v615
    %v1360 = vunpack.c.l.b16 %v616
    %v1361 = vunpack.c.h.b16 %v616
    %v1362 = vunpack.c.l.b16 %v617
    %v1363 = vunpack.c.h.b16 %v617
    %v1364 = vunpack.c.l.b16 %v618
    %v1365 = vunpack.c.h.b16 %v618
    %v1366 = vunpack.c.l.b16 %v619
    %v1367 = vunpack.c.h.b16 %v619
    %v1368 = vunpack.c.l.b16 %v620
    %v1369 = vunpack.c.l.b16 %v621
    %v1370 = vunpack.c.h.b16 %v621
    %v1371 = vunpack.c.l.b16 %v622
    %v1372 = vunpack.c.h.b16 %v622
    %v1373 = vunpack.c.l.b16 %v623
    %v1374 = vunpack.c.h.b16 %v623
    %v1375 = vunpack.c.l.b16 %v624
    %v1376 = vunpack.c.h.b16 %v624
    %v1377 = vunpack.c.l.b16 %v625
    %v1378 = vunpack.c.l.b16 %v626
    %v1379 = vunpack.c.h.b16 %v626
    %v1380 = vunpack.c.l.b16 %v627
    %v1381 = vunpack.c.h.b16 %v627
    %v1382 = vunpack.c.l.b16 %v628
    %v1383 = vunpack.c.h.b16 %v628
    %v1384 = vunpack.c.l.b16 %v629
    %v1385 = vunpack.c.h.b16 %v629
    %v1386 = vunpack.c.l.b16 %v630
    %v1387 = vunpack.c.l.b16 %v631
    %v1388 = vunpack.c.h.b16 %v631
    %v1389 = vunpack.c.l.b16 %v632
    %v1390 = vunpack.c.h.b16 %v632
    %v1391 = vunpack.c.l.b16 %v633
    %v1392 = vunpack.c.h.b16 %v633
    %v1393 = vunpack.c.l.b16 %v634
    %v1394 = vunpack.c.h.b16 %v634
    %v1395 = vunpack.c.l.b16 %v635
    %v1396 = vunpack.c.l.b16 %v636
    %v1397 = vunpack.c.h.b16 %v636
    %v1398 = vunpack.c.l.b16 %v637
    %v1399 = vunpack.c.h.b16 %v637
    %v1400 = vunpack.c.l.b16 %v638
    %v1401 = vunpack.c.h.b16 %v638
    %v1402 = vunpack.c.l.b16 %v639
    %v1403 = vunpack.c.h.b16 %v639
    %v1404 = vunpack.c.l.b16 %v640
    %v1405 = vunpack.c.l.b16 %v641
    %v1406 = vunpack.c.h.b16 %v641
    %v1407 = vunpack.c.l.b16 %v642
    %v1408 = vunpack.c.h.b16 %v642
    %v1409 = vunpack.c.l.b16 %v643
    %v1410 = vunpack.c.h.b16 %v643
    %v1411 = vunpack.c.l.b16 %v644
    %v1412 = vunpack.c.h.b16 %v644
    %v1413 = vunpack.c.l.b16 %v645
    %v1414 = vunpack.c.l.b16 %v646
    %v1415 = vunpack.c.h.b16 %v646
    %v1416 = vunpack.c.l.b16 %v647
    %v1417 = vunpack.c.h.b16 %v647
    %v1418 = vunpack.c.l.b16 %v648
    %v1419 = vunpack.c.h.b16 %v648
    %v1420 = vunpack.c.l.b16 %v649
    %v1421 = vunpack.c.h.b16 %v649
    %v1422 = vunpack.c.l.b16 %v650
    %v1423 = vunpack.c.l.b16 %v651
    %v1424 = vunpack.c.h.b16 %v651
    %v1425 = vunpack.c.l.b16 %v652
    %v1426 = vunpack.c.h.b16 %v652
    %v1427 = vunpack.c.l.b16 %v653
    %v1428 = vunpack.c.h.b16 %v653
    %v1429 = vunpack.c.l.b16 %v654
    %v1430 = vunpack.c.h.b16 %v654
    %v1431 = vunpack.c.l.b16 %v655
    %v1432 = vunpack.c.l.b16 %v656
    %v1433 = vunpack.c.h.b16 %v656
    %v1434 = vunpack.c.l.b16 %v657
    %v1435 = vunpack.c.h.b16 %v657
    %v1436 = vunpack.c.l.b16 %v658
    %v1437 = vunpack.c.h.b16 %v658
    %v1438 = vunpack.c.l.b16 %v659
    %v1439 = vunpack.c.h.b16 %v659
    %v1440 = vunpack.c.l.b16 %v660
    %v1441 = vunpack.c.l.b16 %v661
    %v1442 = vunpack.c.h.b16 %v661
    %v1443 = vunpack.c.l.b16 %v662
    %v1444 = vunpack.c.h.b16 %v662
    %v1445 = vunpack.c.l.b16 %v663
    %v1446 = vunpack.c.h.b16 %v663
    %v1447 = vunpack.c.l.b16 %v664
    %v1448 = vunpack.c.h.b16 %v664
    %v1449 = vunpack.c.l.b16 %v665
    %v1450 = vunpack.c.l.b16 %v666
    %v1451 = vunpack.c.h.b16 %v666
    %v1452 = vunpack.c.l.b16 %v667
    %v1453 = vunpack.c.h.b16 %v667
    %v1454 = vunpack.c.l.b16 %v668
    %v1455 = vunpack.c.h.b16 %v668
    %v1456 = vunpack.c.l.b16 %v669
    %v1457 = vunpack.c.h.b16 %v669
    %v1458 = vunpack.c.l.b16 %v670
    %v1459 = vunpack.c.l.b16 %v671
    %v1460 = vunpack.c.h.b16 %v671
    %v1461 = vunpack.c.l.b16 %v672
    %v1462 = vunpack.c.h.b16 %v672
    %v1463 = vunpack.c.l.b16 %v673
    %v1464 = vunpack.c.h.b16 %v673
    %v1465 = vunpack.c.l.b16 %v674
    %v1466 = vunpack.c.h.b16 %v674
    %v1467 = vunpack.c.l.b16 %v675
    %v1468 = vunpack.c.l.b16 %v676
    %v1469 = vunpack.c.h.b16 %v676
    %v1470 = vunpack.c.l.b16 %v677
    %v1471 = vunpack.c.h.b16 %v677
    %v1472 = vunpack.c.l.b16 %v678
    %v1473 = vunpack.c.h.b16 %v678
    %v1474 = vunpack.c.l.b16 %v679
    %v1475 = vunpack.c.h.b16 %v679
    %v1476 = vunpack.c.l.b16 %v680
    %v1477 = vunpack.c.l.b16 %v681
    %v1478 = vunpack.c.h.b16 %v681
    %v1479 = vunpack.c.l.b16 %v682
    %v1480 = vunpack.c.h.b16 %v682
    %v1481 = vunpack.c.l.b16 %v683
    %v1482 = vunpack.c.h.b16 %v683
    %v1483 = vunpack.c.l.b16 %v684
    %v1484 = vunpack.c.h.b16 %v684
    %v1485 = vunpack.c.l.b16 %v685
    %v1486 = vunpack.c.l.b16 %v686
    %v1487 = vunpack.c.h.b16 %v686
    %v1488 = vunpack.c.l.b16 %v687
    %v1489 = vunpack.c.h.b16 %v687
    %v1490 = vunpack.c.l.b16 %v688
    %v1491 = vunpack.c.h.b16 %v688
    %v1492 = vunpack.c.l.b16 %v689
    %v1493 = vunpack.c.h.b16 %v689
    %v1494 = vunpack.c.l.b16 %v690
    %v1495 = vunpack.c.l.b16 %v691
    %v1496 = vunpack.c.h.b16 %v691
    %v1497 = vunpack.c.l.b16 %v692
    %v1498 = vunpack.c.h.b16 %v692
    %v1499 = vunpack.c.l.b16 %v693
    %v1500 = vunpack.c.h.b16 %v693
    %v1501 = vunpack.c.l.b16 %v694
    %v1502 = vunpack.c.h.b16 %v694
    %v1503 = vunpack.c.l.b16 %v695
    %v1504 = vunpack.c.l.b16 %v696
    %v1505 = vunpack.c.h.b16 %v696
    %v1506 = vunpack.c.l.b16 %v697
    %v1507 = vunpack.c.h.b16 %v697
    %v1508 = vunpack.c.l.b16 %v698
    %v1509 = vunpack.c.h.b16 %v698
    %v1510 = vunpack.c.l.b16 %v699
    %v1511 = vunpack.c.h.b16 %v699
    %v1512 = vunpack.c.l.b16 %v700
    %v1513 = vunpack.c.l.b16 %v701
    %v1514 = vunpack.c.h.b16 %v701
    %v1515 = vunpack.c.l.b16 %v702
    %v1516 = vunpack.c.h.b16 %v702
    %v1517 = vunpack.c.l.b16 %v703
    %v1518 = vunpack.c.h.b16 %v703
    %v1519 = vunpack.c.l.b16 %v704
    %v1520 = vunpack.c.h.b16 %v704
    %v1521 = vunpack.c.l.b16 %v705
    %v1522 = vunpack.c.l.b16 %v706
    %v1523 = vunpack.c.h.b16 %v706
    %v1524 = vunpack.c.l.b16 %v707
    %v1525 = vunpack.c.h.b16 %v707
    %v1526 = vunpack.c.l.b16 %v708
    %v1527 = vunpack.c.h.b16 %v708
    %v1528 = vunpack.c.l.b16 %v709
    %v1529 = vunpack.c.h.b16 %v709
    %v1530 = vunpack.c.l.b16 %v710
    %v1531 = vunpack.c.l.b16 %v711
    %v1532 = vunpack.c.h.b16 %v711
    %v1533 = vunpack.c.l.b16 %v712
    %v1534 = vunpack.c.h.b16 %v712
    %v1535 = vunpack.c.l.b16 %v713
    %v1536 = vunpack.c.h.b16 %v713
    %v1537 = vunpack.c.l.b16 %v714
    %v1538 = vunpack.c.h.b16 %v714
    %v1539 = vunpack.c.l.b16 %v715
    %v1540 = vunpack.c.l.b16 %v716
    %v1541 = vunpack.c.h.b16 %v716
    %v1542 = vunpack.c.l.b16 %v717
    %v1543 = vunpack.c.h.b16 %v717
    %v1544 = vunpack.c.l.b16 %v718
    %v1545 = vunpack.c.h.b16 %v718
    %v1546 = vunpack.c.l.b16 %v719
    %v1547 = vunpack.c.h.b16 %v719
    %v1548 = vunpack.c.l.b16 %v720
    %v1549 = vunpack.c.l.b16 %v721
    %v1550 = vunpack.c.h.b16 %v721
    %v1551 = vunpack.c.l.b16 %v722
    %v1552 = vunpack.c.h.b16 %v722
    %v1553 = vunpack.c.l.b16 %v723
    %v1554 = vunpack.c.h.b16 %v723
    %v1555 = vunpack.c.l.b16 %v724
    %v1556 = vunpack.c.h.b16 %v724
    %v1557 = vunpack.c.l.b16 %v725
    %v1558 = vunpack.c.l.b16 %v726
    %v1559 = vunpack.c.h.b16 %v726
    %v1560 = vunpack.c.l.b16 %v727
    %v1561 = vunpack.c.h.b16 %v727
    %v1562 = vunpack.c.l.b16 %v728
    %v1563 = vunpack.c.h.b16 %v728
    %v1564 = vunpack.c.l.b16 %v729
    %v1565 = vunpack.c.h.b16 %v729
    %v1566 = vunpack.c.l.b16 %v730
    %v1567 = vunpack.c.l.b16 %v731
    %v1568 = vunpack.c.h.b16 %v731
    %v1569 = vunpack.c.l.b16 %v732
    %v1570 = vunpack.c.h.b16 %v732
    %v1571 = vunpack.c.l.b16 %v733
    %v1572 = vunpack.c.h.b16 %v733
    %v1573 = vunpack.c.l.b16 %v734
    %v1574 = vunpack.c.h.b16 %v734
    %v1575 = vunpack.c.l.b16 %v735
    %v1576 = vunpack.c.l.b16 %v736
    %v1577 = vunpack.c.h.b16 %v736
    %v1578 = vunpack.c.l.b16 %v737
    %v1579 = vunpack.c.h.b16 %v737
    %v1580 = vunpack.c.l.b16 %v738
    %v1581 = vunpack.c.h.b16 %v738
    %v1582 = vunpack.c.l.b16 %v739
    %v1583 = vunpack.c.h.b16 %v739
    %v1584 = vunpack.c.l.b16 %v740
    %v1585 = vunpack.c.l.b16 %v741
    %v1586 = vunpack.c.h.b16 %v741
    %v1587 = vunpack.c.l.b16 %v742
    %v1588 = vunpack.c.h.b16 %v742
    %v1589 = vunpack.c.l.b16 %v743
    %v1590 = vunpack.c.h.b16 %v743
    %v1591 = vunpack.c.l.b16 %v744
    %v1592 = vunpack.c.h.b16 %v744
    %v1593 = vunpack.c.l.b16 %v745
    %v1594 = vunpack.c.l.b16 %v746
    %v1595 = vunpack.c.h.b16 %v746
    %v1596 = vunpack.c.l.b16 %v747
    %v1597 = vunpack.c.h.b16 %v747
    %v1598 = vunpack.c.l.b16 %v748
    %v1599 = vunpack.c.h.b16 %v748
    %v1600 = vunpack.c.l.b16 %v749
    %v1601 = vunpack.c.h.b16 %v749
    %v1602 = vunpack.c.l.b16 %v750
    %v1603 = vunpack.c.l.b16 %v751
    %v1604 = vunpack.c.h.b16 %v751
    %v1605 = vunpack.c.l.b16 %v752
    %v1606 = vunpack.c.h.b16 %v752
    %v1607 = vunpack.c.l.b16 %v753
    %v1608 = vunpack.c.h.b16 %v753
    %v1609 = vunpack.c.l.b16 %v754
    %v1610 = vunpack.c.h.b16 %v754
    %v1611 = vunpack.c.l.b16 %v755
    %v1612 = vunpack.c.l.b16 %v756
    %v1613 = vunpack.c.h.b16 %v756
    %v1614 = vunpack.c.l.b16 %v757
    %v1615 = vunpack.c.h.b16 %v757
    %v1616 = vunpack.c.l.b16 %v758
    %v1617 = vunpack.c.h.b16 %v758
    %v1618 = vunpack.c.l.b16 %v759
    %v1619 = vunpack.c.h.b16 %v759
    %v1620 = vunpack.c.l.b16 %v760
    %v1621 = vunpack.c.l.b16 %v761
    %v1622 = vunpack.c.h.b16 %v761
    %v1623 = vunpack.c.l.b16 %v762
    %v1624 = vunpack.c.h.b16 %v762
    %v1625 = vunpack.c.l.b16 %v763
    %v1626 = vunpack.c.h.b16 %v763
    %v1627 = vunpack.c.l.b16 %v764
    %v1628 = vunpack.c.h.b16 %v764
    %v1629 = vunpack.c.l.b16 %v765
    %v1630 = vunpack.c.l.b16 %v766
    %v1631 = vunpack.c.h.b16 %v766
    %v1632 = vunpack.c.l.b16 %v767
    %v1633 = vunpack.c.h.b16 %v767
    %v1634 = vunpack.c.l.b16 %v768
    %v1635 = vunpack.c.h.b16 %v768
    %v1636 = vunpack.c.l.b16 %v769
    %v1637 = vunpack.c.h.b16 %v769
    %v1638 = vunpack.c.l.b16 %v770
    %v1639 = vunpack.c.l.b16 %v771
    %v1640 = vunpack.c.h.b16 %v771
    %v1641 = vunpack.c.l.b16 %v772
    %v1642 = vunpack.c.h.b16 %v772
    %v1643 = vunpack.c.l.b16 %v773
    %v1644 = vunpack.c.h.b16 %v773
    %v1645 = vunpack.c.l.b16 %v774
    %v1646 = vunpack.c.h.b16 %v774
    %v1647 = vunpack.c.l.b16 %v775
    %v1648 = vunpack.c.l.b16 %v776
    %v1649 = vunpack.c.h.b16 %v776
    %v1650 = vunpack.c.l.b16 %v777
    %v1651 = vunpack.c.h.b16 %v777
    %v1652 = vunpack.c.l.b16 %v778
    %v1653 = vunpack.c.h.b16 %v778
    %v1654 = vunpack.c.l.b16 %v779
    %v1655 = vunpack.c.h.b16 %v779
    %v1656 = vunpack.c.l.b16 %v780
    %v1657 = vunpack.c.l.b16 %v781
    %v1658 = vunpack.c.h.b16 %v781
    %v1659 = vunpack.c.l.b16 %v782
    %v1660 = vunpack.c.h.b16 %v782
    %v1661 = vunpack.c.l.b16 %v783
    %v1662 = vunpack.c.h.b16 %v783
    %v1663 = vunpack.c.l.b16 %v784
    %v1664 = vunpack.c.h.b16 %v784
    %v1665 = vunpack.c.l.b16 %v785
    %v1666 = vunpack.c.l.b16 %v786
    %v1667 = vunpack.c.h.b16 %v786
    %v1668 = vunpack.c.l.b16 %v787
    %v1669 = vunpack.c.h.b16 %v787
    %v1670 = vunpack.c.l.b16 %v788
    %v1671 = vunpack.c.h.b16 %v788
    %v1672 = vunpack.c.l.b16 %v789
    %v1673 = vunpack.c.h.b16 %v789
    %v1674 = vunpack.c.l.b16 %v790
    %v1675 = vunpack.c.l.b16 %v791
    %v1676 = vunpack.c.h.b16 %v791
    %v1677 = vunpack.c.l.b16 %v792
    %v1678 = vunpack.c.h.b16 %v792
    %v1679 = vunpack.c.l.b16 %v793
    %v1680 = vunpack.c.h.b16 %v793
    %v1681 = vunpack.c.l.b16 %v794
    %v1682 = vunpack.c.h.b16 %v794
    %v1683 = vunpack.c.l.b16 %v795
    %v1684 = vunpack.c.l.b16 %v796
    %v1685 = vunpack.c.h.b16 %v796
    %v1686 = vunpack.c.l.b16 %v797
    %v1687 = vunpack.c.h.b16 %v797
    %v1688 = vunpack.c.l.b16 %v798
    %v1689 = vunpack.c.h.b16 %v798
    %v1690 = vunpack.c.l.b16 %v799
    %v1691 = vunpack.c.h.b16 %v799
    %v1692 = vunpack.c.l.b16 %v800
    %v1693 = vunpack.c.l.b16 %v801
    %v1694 = vunpack.c.h.b16 %v801
    %v1695 = vunpack.c.l.b16 %v802
    %v1696 = vunpack.c.h.b16 %v802
    %v1697 = vunpack.c.l.b16 %v803
    %v1698 = vunpack.c.h.b16 %v803
    %v1699 = vunpack.c.l.b16 %v804
    %v1700 = vunpack.c.h.b16 %v804
    %v1701 = vunpack.c.l.b16 %v805
    %v1702 = vpack.c.b16 %v1135, %v1126
    %v1703 = vpack.c.b16 %v1136, %v1127
    %v1704 = vpack.c.b16 %v1137, %v1128
    %v1705 = vpack.c.b16 %v1138, %v1129
    %v1706 = vpack.c.b16 %v1139, %v1130
    %v1707 = vpack.c.b16 %v1140, %v1131
    %v1708 = vpack.c.b16 %v1141, %v1132
    %v1709 = vpack.c.b16 %v1142, %v1133
    %v1710 = vpack.c.b16 %v1143, %v1134
    %v1711 = vpack.c.b16 %v1153, %v1144
    %v1712 = vpack.c.b16 %v1154, %v1145
    %v1713 = vpack.c.b16 %v1155, %v1146
    %v1714 = vpack.c.b16 %v1156, %v1147
    %v1715 = vpack.c.b16 %v1157, %v1148
    %v1716 = vpack.c.b16 %v1158, %v1149
    %v1717 = vpack.c.b16 %v1159, %v1150
    %v1718 = vpack.c.b16 %v1160, %v1151
    %v1719 = vpack.c.b16 %v1161, %v1152
    %v1720 = vpack.c.b16 %v1171, %v1162
    %v1721 = vpack.c.b16 %v1172, %v1163
    %v1722 = vpack.c.b16 %v1173, %v1164
    %v1723 = vpack.c.b16 %v1174, %v1165
    %v1724 = vpack.c.b16 %v1175, %v1166
    %v1725 = vpack.c.b16 %v1176, %v1167
    %v1726 = vpack.c.b16 %v1177, %v1168
    %v1727 = vpack.c.b16 %v1178, %v1169
    %v1728 = vpack.c.b16 %v1179, %v1170
    %v1729 = vpack.c.b16 %v1189, %v1180
    %v1730 = vpack.c.b16 %v1190, %v1181
    %v1731 = vpack.c.b16 %v1191, %v1182
    %v1732 = vpack.c.b16 %v1192, %v1183
    %v1733 = vpack.c.b16 %v1193, %v1184
    %v1734 = vpack.c.b16 %v1194, %v1185
    %v1735 = vpack.c.b16 %v1195, %v1186
    %v1736 = vpack.c.b16 %v1196, %v1187
    %v1737 = vpack.c.b16 %v1197, %v1188
    %v1738 = vpack.c.b16 %v1207, %v1198
    %v1739 = vpack.c.b16 %v1208, %v1199
    %v1740 = vpack.c.b16 %v1209, %v1200
    %v1741 = vpack.c.b16 %v1210, %v1201
    %v1742 = vpack.c.b16 %v1211, %v1202
    %v1743 = vpack.c.b16 %v1212, %v1203
    %v1744 = vpack.c.b16 %v1213, %v1204
    %v1745 = vpack.c.b16 %v1214, %v1205
    %v1746 = vpack.c.b16 %v1215, %v1206
    %v1747 = vpack.c.b16 %v1225, %v1216
    %v1748 = vpack.c.b16 %v1226, %v1217
    %v1749 = vpack.c.b16 %v1227, %v1218
    %v1750 = vpack.c.b16 %v1228, %v1219
    %v1751 = vpack.c.b16 %v1229, %v1220
    %v1752 = vpack.c.b16 %v1230, %v1221
    %v1753 = vpack.c.b16 %v1231, %v1222
    %v1754 = vpack.c.b16 %v1232, %v1223
    %v1755 = vpack.c.b16 %v1233, %v1224
    %v1756 = vpack.c.b16 %v1243, %v1234
    %v1757 = vpack.c.b16 %v1244, %v1235
    %v1758 = vpack.c.b16 %v1245, %v1236
    %v1759 = vpack.c.b16 %v1246, %v1237
    %v1760 = vpack.c.b16 %v1247, %v1238
    %v1761 = vpack.c.b16 %v1248, %v1239
    %v1762 = vpack.c.b16 %v1249, %v1240
    %v1763 = vpack.c.b16 %v1250, %v1241
    %v1764 = vpack.c.b16 %v1251, %v1242
    %v1765 = vpack.c.b16 %v1261, %v1252
    %v1766 = vpack.c.b16 %v1262, %v1253
    %v1767 = vpack.c.b16 %v1263, %v1254
    %v1768 = vpack.c.b16 %v1264, %v1255
    %v1769 = vpack.c.b16 %v1265, %v1256
    %v1770 = vpack.c.b16 %v1266, %v1257
    %v1771 = vpack.c.b16 %v1267, %v1258
    %v1772 = vpack.c.b16 %v1268, %v1259
    %v1773 = vpack.c.b16 %v1269, %v1260
    %v1774 = vpack.c.b16 %v1279, %v1270
    %v1775 = vpack.c.b16 %v1280, %v1271
    %v1776 = vpack.c.b16 %v1281, %v1272
    %v1777 = vpack.c.b16 %v1282, %v1273
    %v1778 = vpack.c.b16 %v1283, %v1274
    %v1779 = vpack.c.b16 %v1284, %v1275
    %v1780 = vpack.c.b16 %v1285, %v1276
    %v1781 = vpack.c.b16 %v1286, %v1277
    %v1782 = vpack.c.b16 %v1287, %v1278
    %v1783 = vpack.c.b16 %v1297, %v1288
    %v1784 = vpack.c.b16 %v1298, %v1289
    %v1785 = vpack.c.b16 %v1299, %v1290
    %v1786 = vpack.c.b16 %v1300, %v1291
    %v1787 = vpack.c.b16 %v1301, %v1292
    %v1788 = vpack.c.b16 %v1302, %v1293
    %v1789 = vpack.c.b16 %v1303, %v1294
    %v1790 = vpack.c.b16 %v1304, %v1295
    %v1791 = vpack.c.b16 %v1305, %v1296
    %v1792 = vpack.c.b16 %v1315, %v1306
    %v1793 = vpack.c.b16 %v1316, %v1307
    %v1794 = vpack.c.b16 %v1317, %v1308
    %v1795 = vpack.c.b16 %v1318, %v1309
    %v1796 = vpack.c.b16 %v1319, %v1310
    %v1797 = vpack.c.b16 %v1320, %v1311
    %v1798 = vpack.c.b16 %v1321, %v1312
    %v1799 = vpack.c.b16 %v1322, %v1313
    %v1800 = vpack.c.b16 %v1323, %v1314
    %v1801 = vpack.c.b16 %v1333, %v1324
    %v1802 = vpack.c.b16 %v1334, %v1325
    %v1803 = vpack.c.b16 %v1335, %v1326
    %v1804 = vpack.c.b16 %v1336, %v1327
    %v1805 = vpack.c.b16 %v1337, %v1328
    %v1806 = vpack.c.b16 %v1338, %v1329
    %v1807 = vpack.c.b16 %v1339, %v1330
    %v1808 = vpack.c.b16 %v1340, %v1331
    %v1809 = vpack.c.b16 %v1341, %v1332
    %v1810 = vpack.c.b16 %v1351, %v1342
    %v1811 = vpack.c.b16 %v1352, %v1343
    %v1812 = vpack.c.b16 %v1353, %v1344
    %v1813 = vpack.c.b16 %v1354, %v1345
    %v1814 = vpack.c.b16 %v1355, %v1346
    %v1815 = vpack.c.b16 %v1356, %v1347
    %v1816 = vpack.c.b16 %v1357, %v1348
    %v1817 = vpack.c.b16 %v1358, %v1349
    %v1818 = vpack.c.b16 %v1359, %v1350
    %v1819 = vpack.c.b16 %v1369, %v1360
    %v1820 = vpack.c.b16 %v1370, %v1361
    %v1821 = vpack.c.b16 %v1371, %v1362
    %v1822 = vpack.c.b16 %v1372, %v1363
    %v1823 = vpack.c.b16 %v1373, %v1364
    %v1824 = vpack.c.b16 %v1374, %v1365
    %v1825 = vpack.c.b16 %v1375, %v1366
    %v1826 = vpack.c.b16 %v1376, %v1367
    %v1827 = vpack.c.b16 %v1377, %v1368
    %v1828 = vpack.c.b16 %v1387, %v1378
    %v1829 = vpack.c.b16 %v1388, %v1379
    %v1830 = vpack.c.b16 %v1389, %v1380
    %v1831 = vpack.c.b16 %v1390, %v1381
    %v1832 = vpack.c.b16 %v1391, %v1382
    %v1833 = vpack.c.b16 %v1392, %v1383
    %v1834 = vpack.c.b16 %v1393, %v1384
    %v1835 = vpack.c.b16 %v1394, %v1385
    %v1836 = vpack.c.b16 %v1395, %v1386
    %v1837 = vpack.c.b16 %v1405, %v1396
    %v1838 = vpack.c.b16 %v1406, %v1397
    %v1839 = vpack.c.b16 %v1407, %v1398
    %v1840 = vpack.c.b16 %v1408, %v1399
    %v1841 = vpack.c.b16 %v1409, %v1400
    %v1842 = vpack.c.b16 %v1410, %v1401
    %v1843 = vpack.c.b16 %v1411, %v1402
    %v1844 = vpack.c.b16 %v1412, %v1403
    %v1845 = vpack.c.b16 %v1413, %v1404
    %v1846 = vpack.c.b16 %v1423, %v1414
    %v1847 = vpack.c.b16 %v1424, %v1415
    %v1848 = vpack.c.b16 %v1425, %v1416
    %v1849 = vpack.c.b16 %v1426, %v1417
    %v1850 = vpack.c.b16 %v1427, %v1418
    %v1851 = vpack.c.b16 %v1428, %v1419
    %v1852 = vpack.c.b16 %v1429, %v1420
    %v1853 = vpack.c.b16 %v1430, %v1421
    %v1854 = vpack.c.b16 %v1431, %v1422
    %v1855 = vpack.c.b16 %v1441, %v1432
    %v1856 = vpack.c.b16 %v1442, %v1433
    %v1857 = vpack.c.b16 %v1443, %v1434
    %v1858 = vpack.c.b16 %v1444, %v1435
    %v1859 = vpack.c.b16 %v1445, %v1436
    %v1860 = vpack.c.b16 %v1446, %v1437
    %v1861 = vpack.c.b16 %v1447, %v1438
    %v1862 = vpack.c.b16 %v1448, %v1439
    %v1863 = vpack.c.b16 %v1449, %v1440
    %v1864 = vpack.c.b16 %v1459, %v1450
    %v1865 = vpack.c.b16 %v1460, %v1451
    %v1866 = vpack.c.b16 %v1461, %v1452
    %v1867 = vpack.c.b16 %v1462, %v1453
    %v1868 = vpack.c.b16 %v1463, %v1454
    %v1869 = vpack.c.b16 %v1464, %v1455
    %v1870 = vpack.c.b16 %v1465, %v1456
    %v1871 = vpack.c.b16 %v1466, %v1457
    %v1872 = vpack.c.b16 %v1467, %v1458
    %v1873 = vpack.c.b16 %v1477, %v1468
    %v1874 = vpack.c.b16 %v1478, %v1469
    %v1875 = vpack.c.b16 %v1479, %v1470
    %v1876 = vpack.c.b16 %v1480, %v1471
    %v1877 = vpack.c.b16 %v1481, %v1472
    %v1878 = vpack.c.b16 %v1482, %v1473
    %v1879 = vpack.c.b16 %v1483, %v1474
    %v1880 = vpack.c.b16 %v1484, %v1475
    %v1881 = vpack.c.b16 %v1485, %v1476
    %v1882 = vpack.c.b16 %v1495, %v1486
    %v1883 = vpack.c.b16 %v1496, %v1487
    %v1884 = vpack.c.b16 %v1497, %v1488
    %v1885 = vpack.c.b16 %v1498, %v1489
    %v1886 = vpack.c.b16 %v1499, %v1490
    %v1887 = vpack.c.b16 %v1500, %v1491
    %v1888 = vpack.c.b16 %v1501, %v1492
    %v1889 = vpack.c.b16 %v1502, %v1493
    %v1890 = vpack.c.b16 %v1503, %v1494
    %v1891 = vpack.c.b16 %v1513, %v1504
    %v1892 = vpack.c.b16 %v1514, %v1505
    %v1893 = vpack.c.b16 %v1515, %v1506
    %v1894 = vpack.c.b16 %v1516, %v1507
    %v1895 = vpack.c.b16 %v1517, %v1508
    %v1896 = vpack.c.b16 %v1518, %v1509
    %v1897 = vpack.c.b16 %v1519, %v1510
    %v1898 = vpack.c.b16 %v1520, %v1511
    %v1899 = vpack.c.b16 %v1521, %v1512
    %v1900 = vpack.c.b16 %v1531, %v1522
    %v1901 = vpack.c.b16 %v1532, %v1523
    %v1902 = vpack.c.b16 %v1533, %v1524
    %v1903 = vpack.c.b16 %v1534, %v1525
    %v1904 = vpack.c.b16 %v1535, %v1526
    %v1905 = vpack.c.b16 %v1536, %v1527
    %v1906 = vpack.c.b16 %v1537, %v1528
    %v1907 = vpack.c.b16 %v1538, %v1529
    %v1908 = vpack.c.b16 %v1539, %v1530
    %v1909 = vpack.c.b16 %v1549, %v1540
    %v1910 = vpack.c.b16 %v1550, %v1541
    %v1911 = vpack.c.b16 %v1551, %v1542
    %v1912 = vpack.c.b16 %v1552, %v1543
    %v1913 = vpack.c.b16 %v1553, %v1544
    %v1914 = vpack.c.b16 %v1554, %v1545
    %v1915 = vpack.c.b16 %v1555, %v1546
    %v1916 = vpack.c.b16 %v1556, %v1547
    %v1917 = vpack.c.b16 %v1557, %v1548
    %v1918 = vpack.c.b16 %v1567, %v1558
    %v1919 = vpack.c.b16 %v1568, %v1559
    %v1920 = vpack.c.b16 %v1569, %v1560
    %v1921 = vpack.c.b16 %v1570, %v1561
    %v1922 = vpack.c.b16 %v1571, %v1562
    %v1923 = vpack.c.b16 %v1572, %v1563
    %v1924 = vpack.c.b16 %v1573, %v1564
    %v1925 = vpack.c.b16 %v1574, %v1565
    %v1926 = vpack.c.b16 %v1575, %v1566
    %v1927 = vpack.c.b16 %v1585, %v1576
    %v1928 = vpack.c.b16 %v1586, %v1577
    %v1929 = vpack.c.b16 %v1587, %v1578
    %v1930 = vpack.c.b16 %v1588, %v1579
    %v1931 = vpack.c.b16 %v1589, %v1580
    %v1932 = vpack.c.b16 %v1590, %v1581
    %v1933 = vpack.c.b16 %v1591, %v1582
    %v1934 = vpack.c.b16 %v1592, %v1583
    %v1935 = vpack.c.b16 %v1593, %v1584
    %v1936 = vpack.c.b16 %v1603, %v1594
    %v1937 = vpack.c.b16 %v1604, %v1595
    %v1938 = vpack.c.b16 %v1605, %v1596
    %v1939 = vpack.c.b16 %v1606, %v1597
    %v1940 = vpack.c.b16 %v1607, %v1598
    %v1941 = vpack.c.b16 %v1608, %v1599
    %v1942 = vpack.c.b16 %v1609, %v1600
    %v1943 = vpack.c.b16 %v1610, %v1601
    %v1944 = vpack.c.b16 %v1611, %v1602
    %v1945 = vpack.c.b16 %v1621, %v1612
    %v1946 = vpack.c.b16 %v1622, %v1613
    %v1947 = vpack.c.b16 %v1623, %v1614
    %v1948 = vpack.c.b16 %v1624, %v1615
    %v1949 = vpack.c.b16 %v1625, %v1616
    %v1950 = vpack.c.b16 %v1626, %v1617
    %v1951 = vpack.c.b16 %v1627, %v1618
    %v1952 = vpack.c.b16 %v1628, %v1619
    %v1953 = vpack.c.b16 %v1629, %v1620
    %v1954 = vpack.c.b16 %v1639, %v1630
    %v1955 = vpack.c.b16 %v1640, %v1631
    %v1956 = vpack.c.b16 %v1641, %v1632
    %v1957 = vpack.c.b16 %v1642, %v1633
    %v1958 = vpack.c.b16 %v1643, %v1634
    %v1959 = vpack.c.b16 %v1644, %v1635
    %v1960 = vpack.c.b16 %v1645, %v1636
    %v1961 = vpack.c.b16 %v1646, %v1637
    %v1962 = vpack.c.b16 %v1647, %v1638
    %v1963 = vpack.c.b16 %v1657, %v1648
    %v1964 = vpack.c.b16 %v1658, %v1649
    %v1965 = vpack.c.b16 %v1659, %v1650
    %v1966 = vpack.c.b16 %v1660, %v1651
    %v1967 = vpack.c.b16 %v1661, %v1652
    %v1968 = vpack.c.b16 %v1662, %v1653
    %v1969 = vpack.c.b16 %v1663, %v1654
    %v1970 = vpack.c.b16 %v1664, %v1655
    %v1971 = vpack.c.b16 %v1665, %v1656
    %v1972 = vpack.c.b16 %v1675, %v1666
    %v1973 = vpack.c.b16 %v1676, %v1667
    %v1974 = vpack.c.b16 %v1677, %v1668
    %v1975 = vpack.c.b16 %v1678, %v1669
    %v1976 = vpack.c.b16 %v1679, %v1670
    %v1977 = vpack.c.b16 %v1680, %v1671
    %v1978 = vpack.c.b16 %v1681, %v1672
    %v1979 = vpack.c.b16 %v1682, %v1673
    %v1980 = vpack.c.b16 %v1683, %v1674
    %v1981 = vpack.c.b16 %v1693, %v1684
    %v1982 = vpack.c.b16 %v1694, %v1685
    %v1983 = vpack.c.b16 %v1695, %v1686
    %v1984 = vpack.c.b16 %v1696, %v1687
    %v1985 = vpack.c.b16 %v1697, %v1688
    %v1986 = vpack.c.b16 %v1698, %v1689
    %v1987 = vpack.c.b16 %v1699, %v1690
    %v1988 = vpack.c.b16 %v1700, %v1691
    %v1989 = vpack.c.b16 %v1701, %v1692
    %2278 = vmatprep.subr.bf16.mxu0 %v1703
    %2279 = vmatpush1.bf16.msra.mxu0 %v1702
    %2280 = vmatprep.subr.bf16.mxu0 %v1712
    %2281 = vmatpush1.bf16.msra.mxu0 %v1711
    %2282 = vmatprep.subr.bf16.mxu0 %v1721
    %2283 = vmatpush1.bf16.msra.mxu0 %v1720
    %2284 = vmatprep.subr.bf16.mxu0 %v1730
    %2285 = vmatpush1.bf16.msra.mxu0 %v1729
    %2286 = vmatprep.subr.bf16.mxu0 %v1739
    %2287 = vmatpush1.bf16.msra.mxu0 %v1738
    %2288 = vmatprep.subr.bf16.mxu0 %v1748
    %2289 = vmatpush1.bf16.msra.mxu0 %v1747
    %2290 = vmatprep.subr.bf16.mxu0 %v1757
    %2291 = vmatpush1.bf16.msra.mxu0 %v1756
    %2292 = vmatprep.subr.bf16.mxu0 %v1766
    %2293 = vmatpush1.bf16.msra.mxu0 %v1765
    %2294 = vmatprep.subr.bf16.mxu0 %v1775
    %2295 = vmatpush1.bf16.msra.mxu0 %v1774
    %2296 = vmatprep.subr.bf16.mxu0 %v1784
    %2297 = vmatpush1.bf16.msra.mxu0 %v1783
    %2298 = vmatprep.subr.bf16.mxu0 %v1793
    %2299 = vmatpush1.bf16.msra.mxu0 %v1792
    %2300 = vmatprep.subr.bf16.mxu0 %v1802
    %2301 = vmatpush1.bf16.msra.mxu0 %v1801
    %2302 = vmatprep.subr.bf16.mxu0 %v1811
    %2303 = vmatpush1.bf16.msra.mxu0 %v1810
    %2304 = vmatprep.subr.bf16.mxu0 %v1820
    %2305 = vmatpush1.bf16.msra.mxu0 %v1819
    %2306 = vmatprep.subr.bf16.mxu0 %v1829
    %2307 = vmatpush1.bf16.msra.mxu0 %v1828
    %2308 = vmatprep.subr.bf16.mxu0 %v1838
    %2309 = vmatpush1.bf16.msra.mxu0 %v1837
    %2310 = vmatprep.mubr.bf16.mxu0 %v483
    %2311 = vmatmul.mubr.bf16.gmra.mrb[0].mxu0 %v482
    %v2312 = vpop.f32.mrb[0].mxu0
    %v2313 = vadd.f32 0.0, %v2312
    %v2314 = vpop.f32.mrb[0].mxu0
    %v2315 = vadd.f32 0.0, %v2314
    %v2316 = vpop.f32.mrb[0].mxu0
    %v2317 = vpop.f32.mrb[0].mxu0
    %2318 = vdwg.mxu0
    %2319 = vmatprep.subr.bf16.mxu0 %v1847
    %2320 = vmatpush1.bf16.msra.mxu0 %v1846
    %2321 = vmatprep.subr.bf16.mxu0 %v1856
    %2322 = vmatpush1.bf16.msra.mxu0 %v1855
    %2323 = vmatprep.subr.bf16.mxu0 %v1865
    %2324 = vmatpush1.bf16.msra.mxu0 %v1864
    %2325 = vmatprep.subr.bf16.mxu0 %v1874
    %2326 = vmatpush1.bf16.msra.mxu0 %v1873
    %2327 = vmatprep.subr.bf16.mxu0 %v1883
    %2328 = vmatpush1.bf16.msra.mxu0 %v1882
    %2329 = vmatprep.subr.bf16.mxu0 %v1892
    %2330 = vmatpush1.bf16.msra.mxu0 %v1891
    %2331 = vmatprep.subr.bf16.mxu0 %v1901
    %2332 = vmatpush1.bf16.msra.mxu0 %v1900
    %2333 = vmatprep.subr.bf16.mxu0 %v1910
    %2334 = vmatpush1.bf16.msra.mxu0 %v1909
    %2335 = vmatprep.subr.bf16.mxu0 %v1919
    %2336 = vmatpush1.bf16.msra.mxu0 %v1918
    %2337 = vmatprep.subr.bf16.mxu0 %v1928
    %2338 = vmatpush1.bf16.msra.mxu0 %v1927
    %2339 = vmatprep.subr.bf16.mxu0 %v1937
    %2340 = vmatpush1.bf16.msra.mxu0 %v1936
    %2341 = vmatprep.subr.bf16.mxu0 %v1946
    %2342 = vmatpush1.bf16.msra.mxu0 %v1945
    %2343 = vmatprep.subr.bf16.mxu0 %v1955
    %2344 = vmatpush1.bf16.msra.mxu0 %v1954
    %2345 = vmatprep.subr.bf16.mxu0 %v1964
    %2346 = vmatpush1.bf16.msra.mxu0 %v1963
    %2347 = vmatprep.subr.bf16.mxu0 %v1973
    %2348 = vmatpush1.bf16.msra.mxu0 %v1972
    %2349 = vmatprep.subr.bf16.mxu0 %v1982
    %2350 = vmatpush1.bf16.msra.mxu0 %v1981
    %2351 = vmatprep.mubr.bf16.mxu0 %v485
    %2352 = vmatmul.mubr.bf16.gmra.mrb[0].mxu0 %v484
    %v2353 = vpop.f32.mrb[0].mxu0
    %v2354 = vadd.f32 %v2313, %v2353
    %v2355 = vpop.f32.mrb[0].mxu0
    %v2356 = vadd.f32 %v2315, %v2355
    %v2357 = vpop.f32.mrb[0].mxu0
    %v2358 = vpop.f32.mrb[0].mxu0
    %2359 = vdwg.mxu0
    %2360 = vmatprep.subr.bf16.mxu0 %v1705
    %2361 = vmatpush1.bf16.msra.mxu0 %v1704
    %2362 = vmatprep.subr.bf16.mxu0 %v1714
    %2363 = vmatpush1.bf16.msra.mxu0 %v1713
    %2364 = vmatprep.subr.bf16.mxu0 %v1723
    %2365 = vmatpush1.bf16.msra.mxu0 %v1722
    %2366 = vmatprep.subr.bf16.mxu0 %v1732
    %2367 = vmatpush1.bf16.msra.mxu0 %v1731
    %2368 = vmatprep.subr.bf16.mxu0 %v1741
    %2369 = vmatpush1.bf16.msra.mxu0 %v1740
    %2370 = vmatprep.subr.bf16.mxu0 %v1750
    %2371 = vmatpush1.bf16.msra.mxu0 %v1749
    %2372 = vmatprep.subr.bf16.mxu0 %v1759
    %2373 = vmatpush1.bf16.msra.mxu0 %v1758
    %2374 = vmatprep.subr.bf16.mxu0 %v1768
    %2375 = vmatpush1.bf16.msra.mxu0 %v1767
    %2376 = vmatprep.subr.bf16.mxu0 %v1777
    %2377 = vmatpush1.bf16.msra.mxu0 %v1776
    %2378 = vmatprep.subr.bf16.mxu0 %v1786
    %2379 = vmatpush1.bf16.msra.mxu0 %v1785
    %2380 = vmatprep.subr.bf16.mxu0 %v1795
    %2381 = vmatpush1.bf16.msra.mxu0 %v1794
    %2382 = vmatprep.subr.bf16.mxu0 %v1804
    %2383 = vmatpush1.bf16.msra.mxu0 %v1803
    %2384 = vmatprep.subr.bf16.mxu0 %v1813
    %2385 = vmatpush1.bf16.msra.mxu0 %v1812
    %2386 = vmatprep.subr.bf16.mxu0 %v1822
    %2387 = vmatpush1.bf16.msra.mxu0 %v1821
    %2388 = vmatprep.subr.bf16.mxu0 %v1831
    %2389 = vmatpush1.bf16.msra.mxu0 %v1830
    %2390 = vmatprep.subr.bf16.mxu0 %v1840
    %2391 = vmatpush1.bf16.msra.mxu0 %v1839
    %2392 = vmatprep.mubr.bf16.mxu0 %v483
    %2393 = vmatmul.mubr.bf16.gmra.mrb[0].mxu0 %v482
    %v2394 = vpop.f32.mrb[0].mxu0
    %v2395 = vadd.f32 0.0, %v2394
    %v2396 = vpop.f32.mrb[0].mxu0
    %v2397 = vadd.f32 0.0, %v2396
    %v2398 = vpop.f32.mrb[0].mxu0
    %v2399 = vpop.f32.mrb[0].mxu0
    %2400 = vdwg.mxu0
    %2401 = vmatprep.subr.bf16.mxu0 %v1849
    %2402 = vmatpush1.bf16.msra.mxu0 %v1848
    %2403 = vmatprep.subr.bf16.mxu0 %v1858
    %2404 = vmatpush1.bf16.msra.mxu0 %v1857
    %2405 = vmatprep.subr.bf16.mxu0 %v1867
    %2406 = vmatpush1.bf16.msra.mxu0 %v1866
    %2407 = vmatprep.subr.bf16.mxu0 %v1876
    %2408 = vmatpush1.bf16.msra.mxu0 %v1875
    %2409 = vmatprep.subr.bf16.mxu0 %v1885
    %2410 = vmatpush1.bf16.msra.mxu0 %v1884
    %2411 = vmatprep.subr.bf16.mxu0 %v1894
    %2412 = vmatpush1.bf16.msra.mxu0 %v1893
    %2413 = vmatprep.subr.bf16.mxu0 %v1903
    %2414 = vmatpush1.bf16.msra.mxu0 %v1902
    %2415 = vmatprep.subr.bf16.mxu0 %v1912
    %2416 = vmatpush1.bf16.msra.mxu0 %v1911
    %2417 = vmatprep.subr.bf16.mxu0 %v1921
    %2418 = vmatpush1.bf16.msra.mxu0 %v1920
    %2419 = vmatprep.subr.bf16.mxu0 %v1930
    %2420 = vmatpush1.bf16.msra.mxu0 %v1929
    %2421 = vmatprep.subr.bf16.mxu0 %v1939
    %2422 = vmatpush1.bf16.msra.mxu0 %v1938
    %2423 = vmatprep.subr.bf16.mxu0 %v1948
    %2424 = vmatpush1.bf16.msra.mxu0 %v1947
    %2425 = vmatprep.subr.bf16.mxu0 %v1957
    %2426 = vmatpush1.bf16.msra.mxu0 %v1956
    %2427 = vmatprep.subr.bf16.mxu0 %v1966
    %2428 = vmatpush1.bf16.msra.mxu0 %v1965
    %2429 = vmatprep.subr.bf16.mxu0 %v1975
    %2430 = vmatpush1.bf16.msra.mxu0 %v1974
    %2431 = vmatprep.subr.bf16.mxu0 %v1984
    %2432 = vmatpush1.bf16.msra.mxu0 %v1983
    %2433 = vmatprep.mubr.bf16.mxu0 %v485
    %2434 = vmatmul.mubr.bf16.gmra.mrb[0].mxu0 %v484
    %v2435 = vpop.f32.mrb[0].mxu0
    %v2436 = vadd.f32 %v2395, %v2435
    %v2437 = vpop.f32.mrb[0].mxu0
    %v2438 = vadd.f32 %v2397, %v2437
    %v2439 = vpop.f32.mrb[0].mxu0
    %v2440 = vpop.f32.mrb[0].mxu0
    %2441 = vdwg.mxu0
    %2442 = vmatprep.subr.bf16.mxu0 %v1707
    %2443 = vmatpush1.bf16.msra.mxu0 %v1706
    %2444 = vmatprep.subr.bf16.mxu0 %v1716
    %2445 = vmatpush1.bf16.msra.mxu0 %v1715
    %2446 = vmatprep.subr.bf16.mxu0 %v1725
    %2447 = vmatpush1.bf16.msra.mxu0 %v1724
    %2448 = vmatprep.subr.bf16.mxu0 %v1734
    %2449 = vmatpush1.bf16.msra.mxu0 %v1733
    %2450 = vmatprep.subr.bf16.mxu0 %v1743
    %2451 = vmatpush1.bf16.msra.mxu0 %v1742
    %2452 = vmatprep.subr.bf16.mxu0 %v1752
    %2453 = vmatpush1.bf16.msra.mxu0 %v1751
    %2454 = vmatprep.subr.bf16.mxu0 %v1761
    %2455 = vmatpush1.bf16.msra.mxu0 %v1760
    %2456 = vmatprep.subr.bf16.mxu0 %v1770
    %2457 = vmatpush1.bf16.msra.mxu0 %v1769
    %2458 = vmatprep.subr.bf16.mxu0 %v1779
    %2459 = vmatpush1.bf16.msra.mxu0 %v1778
    %2460 = vmatprep.subr.bf16.mxu0 %v1788
    %2461 = vmatpush1.bf16.msra.mxu0 %v1787
    %2462 = vmatprep.subr.bf16.mxu0 %v1797
    %2463 = vmatpush1.bf16.msra.mxu0 %v1796
    %2464 = vmatprep.subr.bf16.mxu0 %v1806
    %2465 = vmatpush1.bf16.msra.mxu0 %v1805
    %2466 = vmatprep.subr.bf16.mxu0 %v1815
    %2467 = vmatpush1.bf16.msra.mxu0 %v1814
    %2468 = vmatprep.subr.bf16.mxu0 %v1824
    %2469 = vmatpush1.bf16.msra.mxu0 %v1823
    %2470 = vmatprep.subr.bf16.mxu0 %v1833
    %2471 = vmatpush1.bf16.msra.mxu0 %v1832
    %2472 = vmatprep.subr.bf16.mxu0 %v1842
    %2473 = vmatpush1.bf16.msra.mxu0 %v1841
    %2474 = vmatprep.mubr.bf16.mxu0 %v483
    %2475 = vmatmul.mubr.bf16.gmra.mrb[0].mxu0 %v482
    %v2476 = vpop.f32.mrb[0].mxu0
    %v2477 = vadd.f32 0.0, %v2476
    %v2478 = vpop.f32.mrb[0].mxu0
    %v2479 = vadd.f32 0.0, %v2478
    %v2480 = vpop.f32.mrb[0].mxu0
    %v2481 = vpop.f32.mrb[0].mxu0
    %2482 = vdwg.mxu0
    %2483 = vmatprep.subr.bf16.mxu0 %v1851
    %2484 = vmatpush1.bf16.msra.mxu0 %v1850
    %2485 = vmatprep.subr.bf16.mxu0 %v1860
    %2486 = vmatpush1.bf16.msra.mxu0 %v1859
    %2487 = vmatprep.subr.bf16.mxu0 %v1869
    %2488 = vmatpush1.bf16.msra.mxu0 %v1868
    %2489 = vmatprep.subr.bf16.mxu0 %v1878
    %2490 = vmatpush1.bf16.msra.mxu0 %v1877
    %2491 = vmatprep.subr.bf16.mxu0 %v1887
    %2492 = vmatpush1.bf16.msra.mxu0 %v1886
    %2493 = vmatprep.subr.bf16.mxu0 %v1896
    %2494 = vmatpush1.bf16.msra.mxu0 %v1895
    %2495 = vmatprep.subr.bf16.mxu0 %v1905
    %2496 = vmatpush1.bf16.msra.mxu0 %v1904
    %2497 = vmatprep.subr.bf16.mxu0 %v1914
    %2498 = vmatpush1.bf16.msra.mxu0 %v1913
    %2499 = vmatprep.subr.bf16.mxu0 %v1923
    %2500 = vmatpush1.bf16.msra.mxu0 %v1922
    %2501 = vmatprep.subr.bf16.mxu0 %v1932
    %2502 = vmatpush1.bf16.msra.mxu0 %v1931
    %2503 = vmatprep.subr.bf16.mxu0 %v1941
    %2504 = vmatpush1.bf16.msra.mxu0 %v1940
    %2505 = vmatprep.subr.bf16.mxu0 %v1950
    %2506 = vmatpush1.bf16.msra.mxu0 %v1949
    %2507 = vmatprep.subr.bf16.mxu0 %v1959
    %2508 = vmatpush1.bf16.msra.mxu0 %v1958
    %2509 = vmatprep.subr.bf16.mxu0 %v1968
    %2510 = vmatpush1.bf16.msra.mxu0 %v1967
    %2511 = vmatprep.subr.bf16.mxu0 %v1977
    %2512 = vmatpush1.bf16.msra.mxu0 %v1976
    %2513 = vmatprep.subr.bf16.mxu0 %v1986
    %2514 = vmatpush1.bf16.msra.mxu0 %v1985
    %2515 = vmatprep.mubr.bf16.mxu0 %v485
    %2516 = vmatmul.mubr.bf16.gmra.mrb[0].mxu0 %v484
    %v2517 = vpop.f32.mrb[0].mxu0
    %v2518 = vadd.f32 %v2477, %v2517
    %v2519 = vpop.f32.mrb[0].mxu0
    %v2520 = vadd.f32 %v2479, %v2519
    %v2521 = vpop.f32.mrb[0].mxu0
    %v2522 = vpop.f32.mrb[0].mxu0
    %2523 = vdwg.mxu0
    %2524 = vmatprep.subr.bf16.mxu0 %v1709
    %2525 = vmatpush1.bf16.msra.mxu0 %v1708
    %2526 = vmatprep.subr.bf16.mxu0 %v1718
    %2527 = vmatpush1.bf16.msra.mxu0 %v1717
    %2528 = vmatprep.subr.bf16.mxu0 %v1727
    %2529 = vmatpush1.bf16.msra.mxu0 %v1726
    %2530 = vmatprep.subr.bf16.mxu0 %v1736
    %2531 = vmatpush1.bf16.msra.mxu0 %v1735
    %2532 = vmatprep.subr.bf16.mxu0 %v1745
    %2533 = vmatpush1.bf16.msra.mxu0 %v1744
    %2534 = vmatprep.subr.bf16.mxu0 %v1754
    %2535 = vmatpush1.bf16.msra.mxu0 %v1753
    %2536 = vmatprep.subr.bf16.mxu0 %v1763
    %2537 = vmatpush1.bf16.msra.mxu0 %v1762
    %2538 = vmatprep.subr.bf16.mxu0 %v1772
    %2539 = vmatpush1.bf16.msra.mxu0 %v1771
    %2540 = vmatprep.subr.bf16.mxu0 %v1781
    %2541 = vmatpush1.bf16.msra.mxu0 %v1780
    %2542 = vmatprep.subr.bf16.mxu0 %v1790
    %2543 = vmatpush1.bf16.msra.mxu0 %v1789
    %2544 = vmatprep.subr.bf16.mxu0 %v1799
    %2545 = vmatpush1.bf16.msra.mxu0 %v1798
    %2546 = vmatprep.subr.bf16.mxu0 %v1808
    %2547 = vmatpush1.bf16.msra.mxu0 %v1807
    %2548 = vmatprep.subr.bf16.mxu0 %v1817
    %2549 = vmatpush1.bf16.msra.mxu0 %v1816
    %2550 = vmatprep.subr.bf16.mxu0 %v1826
    %2551 = vmatpush1.bf16.msra.mxu0 %v1825
    %2552 = vmatprep.subr.bf16.mxu0 %v1835
    %2553 = vmatpush1.bf16.msra.mxu0 %v1834
    %2554 = vmatprep.subr.bf16.mxu0 %v1844
    %2555 = vmatpush1.bf16.msra.mxu0 %v1843
    %2556 = vmatprep.mubr.bf16.mxu0 %v483
    %2557 = vmatmul.mubr.bf16.gmra.mrb[0].mxu0 %v482
    %v2558 = vpop.f32.mrb[0].mxu0
    %v2559 = vadd.f32 0.0, %v2558
    %v2560 = vpop.f32.mrb[0].mxu0
    %v2561 = vadd.f32 0.0, %v2560
    %v2562 = vpop.f32.mrb[0].mxu0
    %v2563 = vpop.f32.mrb[0].mxu0
    %2564 = vdwg.mxu0
    %2565 = vmatprep.subr.bf16.mxu0 %v1853
    %2566 = vmatpush1.bf16.msra.mxu0 %v1852
    %2567 = vmatprep.subr.bf16.mxu0 %v1862
    %2568 = vmatpush1.bf16.msra.mxu0 %v1861
    %2569 = vmatprep.subr.bf16.mxu0 %v1871
    %2570 = vmatpush1.bf16.msra.mxu0 %v1870
    %2571 = vmatprep.subr.bf16.mxu0 %v1880
    %2572 = vmatpush1.bf16.msra.mxu0 %v1879
    %2573 = vmatprep.subr.bf16.mxu0 %v1889
    %2574 = vmatpush1.bf16.msra.mxu0 %v1888
    %2575 = vmatprep.subr.bf16.mxu0 %v1898
    %2576 = vmatpush1.bf16.msra.mxu0 %v1897
    %2577 = vmatprep.subr.bf16.mxu0 %v1907
    %2578 = vmatpush1.bf16.msra.mxu0 %v1906
    %2579 = vmatprep.subr.bf16.mxu0 %v1916
    %2580 = vmatpush1.bf16.msra.mxu0 %v1915
    %2581 = vmatprep.subr.bf16.mxu0 %v1925
    %2582 = vmatpush1.bf16.msra.mxu0 %v1924
    %2583 = vmatprep.subr.bf16.mxu0 %v1934
    %2584 = vmatpush1.bf16.msra.mxu0 %v1933
    %2585 = vmatprep.subr.bf16.mxu0 %v1943
    %2586 = vmatpush1.bf16.msra.mxu0 %v1942
    %2587 = vmatprep.subr.bf16.mxu0 %v1952
    %2588 = vmatpush1.bf16.msra.mxu0 %v1951
    %2589 = vmatprep.subr.bf16.mxu0 %v1961
    %2590 = vmatpush1.bf16.msra.mxu0 %v1960
    %2591 = vmatprep.subr.bf16.mxu0 %v1970
    %2592 = vmatpush1.bf16.msra.mxu0 %v1969
    %2593 = vmatprep.subr.bf16.mxu0 %v1979
    %2594 = vmatpush1.bf16.msra.mxu0 %v1978
    %2595 = vmatprep.subr.bf16.mxu0 %v1988
    %2596 = vmatpush1.bf16.msra.mxu0 %v1987
    %2597 = vmatprep.mubr.bf16.mxu0 %v485
    %2598 = vmatmul.mubr.bf16.gmra.mrb[0].mxu0 %v484
    %v2599 = vpop.f32.mrb[0].mxu0
    %v2600 = vadd.f32 %v2559, %v2599
    %v2601 = vpop.f32.mrb[0].mxu0
    %v2602 = vadd.f32 %v2561, %v2601
    %v2603 = vpop.f32.mrb[0].mxu0
    %v2604 = vpop.f32.mrb[0].mxu0
    %2605 = vdwg.mxu0
    %2606 = vmatprep.subr.bf16.mxu0 0
    %2607 = vmatpush1.bf16.msra.mxu0 %v1710
    %2608 = vmatprep.subr.bf16.mxu0 0
    %2609 = vmatpush1.bf16.msra.mxu0 %v1719
    %2610 = vmatprep.subr.bf16.mxu0 0
    %2611 = vmatpush1.bf16.msra.mxu0 %v1728
    %2612 = vmatprep.subr.bf16.mxu0 0
    %2613 = vmatpush1.bf16.msra.mxu0 %v1737
    %2614 = vmatprep.subr.bf16.mxu0 0
    %2615 = vmatpush1.bf16.msra.mxu0 %v1746
    %2616 = vmatprep.subr.bf16.mxu0 0
    %2617 = vmatpush1.bf16.msra.mxu0 %v1755
    %2618 = vmatprep.subr.bf16.mxu0 0
    %2619 = vmatpush1.bf16.msra.mxu0 %v1764
    %2620 = vmatprep.subr.bf16.mxu0 0
    %2621 = vmatpush1.bf16.msra.mxu0 %v1773
    %2622 = vmatprep.subr.bf16.mxu0 0
    %2623 = vmatpush1.bf16.msra.mxu0 %v1782
    %2624 = vmatprep.subr.bf16.mxu0 0
    %2625 = vmatpush1.bf16.msra.mxu0 %v1791
    %2626 = vmatprep.subr.bf16.mxu0 0
    %2627 = vmatpush1.bf16.msra.mxu0 %v1800
    %2628 = vmatprep.subr.bf16.mxu0 0
    %2629 = vmatpush1.bf16.msra.mxu0 %v1809
    %2630 = vmatprep.subr.bf16.mxu0 0
    %2631 = vmatpush1.bf16.msra.mxu0 %v1818
    %2632 = vmatprep.subr.bf16.mxu0 0
    %2633 = vmatpush1.bf16.msra.mxu0 %v1827
    %2634 = vmatprep.subr.bf16.mxu0 0
    %2635 = vmatpush1.bf16.msra.mxu0 %v1836
    %2636 = vmatprep.subr.bf16.mxu0 0
    %2637 = vmatpush1.bf16.msra.mxu0 %v1845
    %2638 = vmatprep.mubr.bf16.mxu0 %v483
    %2639 = vmatmul.mubr.bf16.gmra.mrb[0].mxu0 %v482
    %v2640 = vpop.f32.mrb[0].mxu0
    %v2641 = vadd.f32 0.0, %v2640
    %v2642 = vpop.f32.mrb[0].mxu0
    %v2643 = vpop.f32.mrb[0].mxu0
    %v2644 = vpop.f32.mrb[0].mxu0
    %2645 = vdwg.mxu0
    %2646 = vmatprep.subr.bf16.mxu0 0
    %2647 = vmatpush1.bf16.msra.mxu0 %v1854
    %2648 = vmatprep.subr.bf16.mxu0 0
    %2649 = vmatpush1.bf16.msra.mxu0 %v1863
    %2650 = vmatprep.subr.bf16.mxu0 0
    %2651 = vmatpush1.bf16.msra.mxu0 %v1872
    %2652 = vmatprep.subr.bf16.mxu0 0
    %2653 = vmatpush1.bf16.msra.mxu0 %v1881
    %2654 = vmatprep.subr.bf16.mxu0 0
    %2655 = vmatpush1.bf16.msra.mxu0 %v1890
    %2656 = vmatprep.subr.bf16.mxu0 0
    %2657 = vmatpush1.bf16.msra.mxu0 %v1899
    %2658 = vmatprep.subr.bf16.mxu0 0
    %2659 = vmatpush1.bf16.msra.mxu0 %v1908
    %2660 = vmatprep.subr.bf16.mxu0 0
    %2661 = vmatpush1.bf16.msra.mxu0 %v1917
    %2662 = vmatprep.subr.bf16.mxu0 0
    %2663 = vmatpush1.bf16.msra.mxu0 %v1926
    %2664 = vmatprep.subr.bf16.mxu0 0
    %2665 = vmatpush1.bf16.msra.mxu0 %v1935
    %2666 = vmatprep.subr.bf16.mxu0 0
    %2667 = vmatpush1.bf16.msra.mxu0 %v1944
    %2668 = vmatprep.subr.bf16.mxu0 0
    %2669 = vmatpush1.bf16.msra.mxu0 %v1953
    %2670 = vmatprep.subr.bf16.mxu0 0
    %2671 = vmatpush1.bf16.msra.mxu0 %v1962
    %2672 = vmatprep.subr.bf16.mxu0 0
    %2673 = vmatpush1.bf16.msra.mxu0 %v1971
    %2674 = vmatprep.subr.bf16.mxu0 0
    %2675 = vmatpush1.bf16.msra.mxu0 %v1980
    %2676 = vmatprep.subr.bf16.mxu0 0
    %2677 = vmatpush1.bf16.msra.mxu0 %v1989
    %2678 = vmatprep.mubr.bf16.mxu0 %v485
    %2679 = vmatmul.mubr.bf16.gmra.mrb[0].mxu0 %v484
    %v2680 = vpop.f32.mrb[0].mxu0
    %v2681 = vadd.f32 %v2641, %v2680
    %v2682 = vpop.f32.mrb[0].mxu0
    %v2683 = vpop.f32.mrb[0].mxu0
    %v2684 = vpop.f32.mrb[0].mxu0
    %2685 = vdwg.mxu0
    %v2686 = vmax.f32 %v2354, %v2356
    %v2687 = vmax.f32 %v2686, %v2436
    %v2688 = vmax.f32 %v2687, %v2438
    %v2689 = vmax.f32 %v2688, %v2518
    %v2690 = vmax.f32 %v2689, %v2520
    %v2691 = vmax.f32 %v2690, %v2600
    %v2692 = vmax.f32 %v2691, %v2602
    %v2693 = vmax.f32 %v2692, %v2681
    %v2694 = vld [vmem:[#allocation10] sm:$0x1]
    %v2696 = vlaneseq
    %v2697 = vshrl.u32 %v2696, 7
    %v2698 = vsub.s32 0, %v2697
    %v2699 = vrot.slane %v2694, %v2698
    %v2701 = vadd.f32 %v2693, %v2699
    %v2702 = vtanh.pop %v2701
    %v2703 = vpack.c.bf16 %v2702, %v2702
    %v2704 = vld [vmem:[#allocation11] sm:$0xf]
    %v2705 = vld [vmem:[#allocation11 + $0x4] sm:$0xf]
    %v2706 = vld [vmem:[#allocation11 + $0x8] sm:$0xf]
    %v2707 = vld [vmem:[#allocation11 + $0xc] sm:$0xf]
    %v2708 = vld [vmem:[#allocation11 + $0x10] sm:$0xf]
    %v2709 = vld [vmem:[#allocation11 + $0x14] sm:$0xf]
    %v2710 = vld [vmem:[#allocation11 + $0x18] sm:$0xf]
    %v2711 = vld [vmem:[#allocation11 + $0x1c] sm:$0xf]
    %v2712 = vld [vmem:[#allocation11 + $0x20] sm:$0xf]
    %v2713 = vld [vmem:[#allocation11 + $0x24] sm:$0xf]
    %v2714 = vld [vmem:[#allocation11 + $0x28] sm:$0xf]
    %v2715 = vld [vmem:[#allocation11 + $0x2c] sm:$0xf]
    %v2716 = vld [vmem:[#allocation11 + $0x30] sm:$0xf]
    %v2717 = vld [vmem:[#allocation11 + $0x34] sm:$0xf]
    %v2718 = vld [vmem:[#allocation11 + $0x38] sm:$0xf]
    %v2719 = vld [vmem:[#allocation11 + $0x3c] sm:$0xf]
    %v2720 = vld [vmem:[#allocation13] sm:$0x1]
    %v2722 = vlaneseq
    %v2723 = vshrl.u32 %v2722, 7
    %v2724 = vsub.s32 0, %v2723
    %v2725 = vrot.slane %v2720, %v2724
    %v2743 = vunpack.c.l.b16 %v2704
    %v2744 = vunpack.c.l.b16 %v2705
    %v2745 = vunpack.c.l.b16 %v2706
    %v2746 = vunpack.c.l.b16 %v2707
    %v2747 = vunpack.c.l.b16 %v2708
    %v2748 = vunpack.c.l.b16 %v2709
    %v2749 = vunpack.c.l.b16 %v2710
    %v2750 = vunpack.c.l.b16 %v2711
    %v2751 = vunpack.c.l.b16 %v2712
    %v2752 = vunpack.c.l.b16 %v2713
    %v2753 = vunpack.c.l.b16 %v2714
    %v2754 = vunpack.c.l.b16 %v2715
    %v2755 = vunpack.c.l.b16 %v2716
    %v2756 = vunpack.c.l.b16 %v2717
    %v2757 = vunpack.c.l.b16 %v2718
    %v2758 = vunpack.c.l.b16 %v2719
    %v2759 = vpack.c.b16 %v2744, %v2743
    %v2760 = vpack.c.b16 %v2746, %v2745
    %v2761 = vpack.c.b16 %v2748, %v2747
    %v2762 = vpack.c.b16 %v2750, %v2749
    %v2763 = vpack.c.b16 %v2752, %v2751
    %v2764 = vpack.c.b16 %v2754, %v2753
    %v2765 = vpack.c.b16 %v2756, %v2755
    %v2766 = vpack.c.b16 %v2758, %v2757
    %2775 = vmatprep.subr.bf16.mxu0 0
    %2776 = vmatpush1.bf16.msra.mxu0 %v2759
    %2777 = vmatprep.subr.bf16.mxu0 0
    %2778 = vmatpush1.bf16.msra.mxu0 %v2760
    %2779 = vmatprep.subr.bf16.mxu0 0
    %2780 = vmatpush1.bf16.msra.mxu0 %v2761
    %2781 = vmatprep.subr.bf16.mxu0 0
    %2782 = vmatpush1.bf16.msra.mxu0 %v2762
    %2783 = vmatprep.subr.bf16.mxu0 0
    %2784 = vmatpush1.bf16.msra.mxu0 %v2763
    %2785 = vmatprep.subr.bf16.mxu0 0
    %2786 = vmatpush1.bf16.msra.mxu0 %v2764
    %2787 = vmatprep.subr.bf16.mxu0 0
    %2788 = vmatpush1.bf16.msra.mxu0 %v2765
    %2789 = vmatprep.subr.bf16.mxu0 0
    %2790 = vmatpush1.bf16.msra.mxu0 %v2766
    %2791 = vmatprep.subr.bf16.mxu0 0
    %2792 = vmatpush1.bf16.msra.mxu0 0
    %2793 = vmatprep.subr.bf16.mxu0 0
    %2794 = vmatpush1.bf16.msra.mxu0 0
    %2795 = vmatprep.subr.bf16.mxu0 0
    %2796 = vmatpush1.bf16.msra.mxu0 0
    %2797 = vmatprep.subr.bf16.mxu0 0
    %2798 = vmatpush1.bf16.msra.mxu0 0
    %2799 = vmatprep.subr.bf16.mxu0 0
    %2800 = vmatpush1.bf16.msra.mxu0 0
    %2801 = vmatprep.subr.bf16.mxu0 0
    %2802 = vmatpush1.bf16.msra.mxu0 0
    %2803 = vmatprep.subr.bf16.mxu0 0
    %2804 = vmatpush1.bf16.msra.mxu0 0
    %2805 = vmatprep.subr.bf16.mxu0 0
    %2806 = vmatpush1.bf16.msra.mxu0 0
    %2807 = vmatprep.mubr.bf16.mxu0 0
    %2808 = vmatmul.mubr.bf16.gmra.mrb[0].mxu0 %v2703
    %v2809 = vpop.f32.mrb[0].mxu0
    %v2810 = vadd.f32 %v2725, %v2809
    %v2811 = vpop.f32.mrb[0].mxu0
    %v2812 = vpop.f32.mrb[0].mxu0
    %v2813 = vpop.f32.mrb[0].mxu0
    %2814 = vdwg.mxu0
    %v2815 = vmul.f32 %v2810, 0.5
    %v2816 = vtanh.pop %v2815
    %v2817 = vadd.f32 %v2816, 1.0
    %v2818 = vmul.f32 %v2817, 0.5
    %v2819 = vpack.c.bf16 %v2818, %v2818
    %v2820 = vld [vmem:[#allocation14] sm:$0xf]
    %v2821 = vld [vmem:[#allocation14 + $0x4] sm:$0xf]
    %v2822 = vld [vmem:[#allocation14 + $0x8] sm:$0xf]
    %v2823 = vld [vmem:[#allocation14 + $0xc] sm:$0xf]
    %v2824 = vld [vmem:[#allocation14 + $0x10] sm:$0xf]
    %v2825 = vld [vmem:[#allocation14 + $0x14] sm:$0xf]
    %v2826 = vld [vmem:[#allocation14 + $0x18] sm:$0xf]
    %v2827 = vld [vmem:[#allocation14 + $0x1c] sm:$0xf]
    %v2828 = vld [vmem:[#allocation14 + $0x20] sm:$0xf]
    %v2829 = vld [vmem:[#allocation14 + $0x24] sm:$0xf]
    %v2830 = vld [vmem:[#allocation14 + $0x28] sm:$0xf]
    %v2831 = vld [vmem:[#allocation14 + $0x2c] sm:$0xf]
    %v2832 = vld [vmem:[#allocation14 + $0x30] sm:$0xf]
    %v2833 = vld [vmem:[#allocation14 + $0x34] sm:$0xf]
    %v2834 = vld [vmem:[#allocation14 + $0x38] sm:$0xf]
    %v2835 = vld [vmem:[#allocation14 + $0x3c] sm:$0xf]
    %v2836 = vld [vmem:[#allocation16] sm:$0x1]
    %v2838 = vlaneseq
    %v2839 = vshrl.u32 %v2838, 7
    %v2840 = vsub.s32 0, %v2839
    %v2841 = vrot.slane %v2836, %v2840
    %v2859 = vunpack.c.l.b16 %v2820
    %v2860 = vunpack.c.l.b16 %v2821
    %v2861 = vunpack.c.l.b16 %v2822
    %v2862 = vunpack.c.l.b16 %v2823
    %v2863 = vunpack.c.l.b16 %v2824
    %v2864 = vunpack.c.l.b16 %v2825
    %v2865 = vunpack.c.l.b16 %v2826
    %v2866 = vunpack.c.l.b16 %v2827
    %v2867 = vunpack.c.l.b16 %v2828
    %v2868 = vunpack.c.l.b16 %v2829
    %v2869 = vunpack.c.l.b16 %v2830
    %v2870 = vunpack.c.l.b16 %v2831
    %v2871 = vunpack.c.l.b16 %v2832
    %v2872 = vunpack.c.l.b16 %v2833
    %v2873 = vunpack.c.l.b16 %v2834
    %v2874 = vunpack.c.l.b16 %v2835
    %v2875 = vpack.c.b16 %v2860, %v2859
    %v2876 = vpack.c.b16 %v2862, %v2861
    %v2877 = vpack.c.b16 %v2864, %v2863
    %v2878 = vpack.c.b16 %v2866, %v2865
    %v2879 = vpack.c.b16 %v2868, %v2867
    %v2880 = vpack.c.b16 %v2870, %v2869
    %v2881 = vpack.c.b16 %v2872, %v2871
    %v2882 = vpack.c.b16 %v2874, %v2873
    %2891 = vmatprep.subr.bf16.mxu0 0
    %2892 = vmatpush1.bf16.msra.mxu0 %v2875
    %2893 = vmatprep.subr.bf16.mxu0 0
    %2894 = vmatpush1.bf16.msra.mxu0 %v2876
    %2895 = vmatprep.subr.bf16.mxu0 0
    %2896 = vmatpush1.bf16.msra.mxu0 %v2877
    %2897 = vmatprep.subr.bf16.mxu0 0
    %2898 = vmatpush1.bf16.msra.mxu0 %v2878
    %2899 = vmatprep.subr.bf16.mxu0 0
    %2900 = vmatpush1.bf16.msra.mxu0 %v2879
    %2901 = vmatprep.subr.bf16.mxu0 0
    %2902 = vmatpush1.bf16.msra.mxu0 %v2880
    %2903 = vmatprep.subr.bf16.mxu0 0
    %2904 = vmatpush1.bf16.msra.mxu0 %v2881
    %2905 = vmatprep.subr.bf16.mxu0 0
    %2906 = vmatpush1.bf16.msra.mxu0 %v2882
    %2907 = vmatprep.subr.bf16.mxu0 0
    %2908 = vmatpush1.bf16.msra.mxu0 0
    %2909 = vmatprep.subr.bf16.mxu0 0
    %2910 = vmatpush1.bf16.msra.mxu0 0
    %2911 = vmatprep.subr.bf16.mxu0 0
    %2912 = vmatpush1.bf16.msra.mxu0 0
    %2913 = vmatprep.subr.bf16.mxu0 0
    %2914 = vmatpush1.bf16.msra.mxu0 0
    %2915 = vmatprep.subr.bf16.mxu0 0
    %2916 = vmatpush1.bf16.msra.mxu0 0
    %2917 = vmatprep.subr.bf16.mxu0 0
    %2918 = vmatpush1.bf16.msra.mxu0 0
    %2919 = vmatprep.subr.bf16.mxu0 0
    %2920 = vmatpush1.bf16.msra.mxu0 0
    %2921 = vmatprep.subr.bf16.mxu0 0
    %2922 = vmatpush1.bf16.msra.mxu0 0
    %2923 = vmatprep.mubr.bf16.mxu0 0
    %2924 = vmatmul.mubr.bf16.gmra.mrb[0].mxu0 %v2819
    %v2925 = vpop.f32.mrb[0].mxu0
    %v2926 = vadd.f32 %v2841, %v2925
    %v2927 = vpop.f32.mrb[0].mxu0
    %v2928 = vpop.f32.mrb[0].mxu0
    %v2929 = vpop.f32.mrb[0].mxu0
    %2930 = vdwg.mxu0
    %2931 = vst [vmem:[#allocation17] sm:$0xff] %v2926
    // Predicated region
    $region74: #{tpu_custom_call.1} parent=1 // pred_check
      _
    $region75: #{tpu_custom_call.1} parent=1 // pred_check_branch
      %2933 = sbr.rel (0) target = $region77
    $region76: #{tpu_custom_call.1} parent=1 // pred_region
      %s2935 = ssub.s32 128, 128
      %2936 = vsyncadd [#allocation4], %s2935
      %s2938 = sshll.u32 [#allocation17], 4
      %s2939 = int_to_ptr.vmem [resolvable:$true] %s2938
      %2941 = dma.vmem_to_hbm [thread:$0]  %s2939, 128, %s9, [#allocation4]
    $region77: #{tpu_custom_call.1} parent=1 // pred_fallthru
      _
    // Predicated region
    $region78: #{tpu_custom_call.1} parent=1 // pred_check
      _
    $region79: #{tpu_custom_call.1} parent=1 // pred_check_branch
      %2943 = sbr.rel (0) target = $region81
    $region80: #{tpu_custom_call.1} parent=1 // pred_region
      %2944 = dma.done [#allocation4], 128
    $region81: #{tpu_custom_call.1} parent=1 // pred_fallthru
      _
    %2945 = vsyncpa [#allocation3], 1
    %2946 = vsyncpa [#allocation6], 1
    %2947 = vsyncpa [#allocation9], 1
    %2948 = vsyncpa [#allocation12], 1
    %2949 = vsyncpa [#allocation15], 1
    %2950 = vsyncpa [#allocation4], 1

</llo_original>
